<compile_context>
chip_gen: v6e
topology: v6e:2x2x1
jax: 0.10.0
libtpu: 0.0.40
codegen_flags: <defaults>
</compile_context>

<pallas_src>
import functools

import numpy as np
import jax
import jax.numpy as jnp
from jax import lax
from jax.experimental import pallas as pl
from jax.experimental.pallas import tpu as pltpu


def _round_up(x, m):
    return ((x + m - 1) // m) * m


def tatt1_kernel(seq_ref, w2_ref, wcomb_ref, b_ref, v_ref,
                 gamma_ref, beta_ref, mask_ref, out_ref, *, t_real):
    """Whole TATT_1 forward on padded, lane-dense tiles.

    seq_ref  : (B, C, N, TPc)   zero-padded in the time (lane) axis
    w2_ref   : (1, 1, N, 1)     conv2 1x1 weight
    wcomb_ref: (C*N, C)         w1 folded into w:  Wcomb[c*N+n, k] = w1[c]*w[n,k]
    b_ref    : (TPr, TPc)       zero-padded bias
    v_ref    : (TPr, TPr)       zero-padded v  (padded rows/cols are exactly 0)
    gamma/beta: (1, TPc)        BatchNorm1d affine params (per column)
    mask_ref : (TPr, TPc)       block mask, padded entries = -1e13
    out_ref  : (B, TPr, TPc)    softmax output (sliced to (B, T, T) in the wrapper)
    """
    Bn, C, N, TPc = seq_ref.shape
    TPr = out_ref.shape[1]

    seq = seq_ref[...]                                            # (B, C, N, TPc)

    # f2[b,c,u] = sum_n seq[b,c,n,u] * w2[n]   (VPU mul + small sublane reduce)
    f2 = jnp.sum(seq * w2_ref[...], axis=2)                       # (B, C, TPc)

    # tmp[b,t,k] = sum_{c,n} seq[b,c,n,t] * w1[c] * w[n,k]
    # -> single K = C*N = 64 MXU contraction via the folded weight Wcomb
    #    (replaces the old f1 materialization + K=16 matmul).
    seq_flat = seq.reshape(Bn, C * N, TPc)                        # merge (C,N): N is 8-aligned
    tmp_full = jnp.einsum('bkt,kc->btc', seq_flat, wcomb_ref[...],
                          preferred_element_type=jnp.float32)     # (B, TPc, C)
    tmp = tmp_full[:, :TPr, :]                                    # (B, TPr, C); padded rows are 0

    # pre[b,t,u] = sum_c tmp[b,t,c] * f2[b,c,u]
    # K = C = 4 -> unrolled VPU broadcast-FMAs instead of a 128/256-padded MXU op.
    pre = tmp[:, :, 0:1] * f2[:, 0:1, :]
    for c in range(1, C):
        pre = pre + tmp[:, :, c:c + 1] * f2[:, c:c + 1, :]
    lg = jax.nn.sigmoid(pre + b_ref[...])                         # (B, TPr, TPc)

    # v @ lg : per-batch (TPr,TPr)@(TPr,TPc) MXU matmuls, v reused (no broadcast_to).
    # (Flattening the batch into the lane dim would save one MXU push at large B;
    #  at B=2 the extra transposes cost more than they save, so it is skipped.)
    V = v_ref[...]
    x = jnp.concatenate(
        [jnp.dot(V, lg[bb], preferred_element_type=jnp.float32)[None]
         for bb in range(Bn)], axis=0)                            # (B, TPr, TPc)

    # BatchNorm1d(tem_size): training-mode (biased) stats per column over (batch, row).
    # Padded rows of x are exactly 0 (v's padded rows/cols are 0), so summing over
    # all TPr rows and dividing by the real count B*t_real gives the exact mean.
    # TODO(synk): BatchNorm1d running_mean/running_var buffer updates are stateful
    #             side effects and are not tracked here (training-mode forward only).
    inv_cnt = 1.0 / (Bn * t_real)
    x2 = x.reshape(Bn * TPr, TPc)                                 # fused 2-D reduction view
    mean = jnp.sum(x2, axis=0, keepdims=True) * inv_cnt           # (1, TPc)
    d2 = x2 - mean
    # Exclude the zero-padded rows from the variance sum (they would add mean^2 each).
    rows = lax.broadcasted_iota(jnp.int32, (Bn * TPr, TPc), 0)
    rowvalid = ((rows % TPr) < t_real).astype(jnp.float32)
    var = jnp.sum(d2 * d2 * rowvalid, axis=0, keepdims=True) * inv_cnt
    z2 = gamma_ref[...] * d2 * lax.rsqrt(var + 1e-5) + beta_ref[...]
    z = z2.reshape(Bn, TPr, TPc)

    # Masked softmax over the last (lane) axis; divide goes to the EUP.
    xm = z + mask_ref[...]
    xm = xm - jnp.max(xm, axis=-1, keepdims=True)
    e = jnp.exp(xm)
    denom = jnp.sum(e, axis=-1, keepdims=True)
    out_ref[...] = e * pl.reciprocal(denom, approx=True)


def _full_spec(a):
    zeros = (0,) * a.ndim
    return pl.BlockSpec(a.shape, lambda i, z=zeros: z)


def tatt1_forward(seq, params):
    B, C, N, T = seq.shape
    TP_R = _round_up(T, 8)      # row (sublane) padding:  60 -> 64
    TP_C = _round_up(T, 128)    # col (lane)    padding:  60 -> 128  (unmasked stores)
    NEG = -1e13

    w1 = params['w1'].reshape(C)
    w2 = params['w2'].reshape(1, 1, N, 1)
    # Fold conv1's 1x1 weight into w:  Wcomb[c*N+n, k] = w1[c] * w[n, k]
    wcomb = (w1[:, None, None] * params['w'][None, :, :]).reshape(C * N, -1)

    seq_p = jnp.pad(seq, ((0, 0), (0, 0), (0, 0), (0, TP_C - T)))
    b_p = jnp.pad(params['b'], ((0, TP_R - T), (0, TP_C - T)))
    v_p = jnp.pad(params['v'], ((0, TP_R - T), (0, TP_R - T)))
    gamma_p = jnp.pad(params['gamma'].reshape(-1), (0, TP_C - T)).reshape(1, TP_C)
    beta_p = jnp.pad(params['beta'].reshape(-1), (0, TP_C - T)).reshape(1, TP_C)
    mask_p = jnp.pad(params['mask'], ((0, TP_R - T), (0, TP_C - T)),
                     constant_values=NEG)

    args = (seq_p, w2, wcomb, b_p, v_p, gamma_p, beta_p, mask_p)
    kernel = functools.partial(tatt1_kernel, t_real=T)

    out_p = pl.pallas_call(
        kernel,
        out_shape=jax.ShapeDtypeStruct((B, TP_R, TP_C), jnp.float32),
        grid=(1,),
        in_specs=[_full_spec(a) for a in args],
        out_specs=pl.BlockSpec((B, TP_R, TP_C), lambda i: (0, 0, 0)),
        compiler_params=pltpu.CompilerParams(
            dimension_semantics=("arbitrary",)),
    )(*args)

    # Slice the lane-dense padded result back to the module's (B, T, T).
    return out_p[:, :T, :T]


def tatt1_reference(seq, p):
    """Pure-JAX reference mirroring the PyTorch module (training-mode BN)."""
    f1 = jnp.einsum('bcnt,c->btn', seq, p['w1'])                  # conv1 + squeeze
    f2 = jnp.einsum('bcnt,n->bct', seq, p['w2'])                  # conv2 + squeeze
    tmp = jnp.einsum('btn,nc->btc', f1, p['w'])
    lg = jax.nn.sigmoid(jnp.einsum('btc,bcs->bts', tmp, f2) + p['b'])
    lg = jnp.einsum('ts,bsu->btu', p['v'], lg)
    mean = jnp.mean(lg, axis=(0, 1), keepdims=True)               # per column u
    var = jnp.mean((lg - mean) ** 2, axis=(0, 1), keepdims=True)  # biased (training mode)
    z = p['gamma'] * (lg - mean) * lax.rsqrt(var + 1e-5) + p['beta']
    return jax.nn.softmax(z + p['mask'], axis=-1)


def make_params(key, c_in, num_nodes, tem_size):
    k1, k2, k3, k4 = jax.random.split(key, 4)

    lim1 = 1.0 / np.sqrt(c_in)
    w1 = jax.random.uniform(k1, (c_in,), jnp.float32, -lim1, lim1)
    lim2 = 1.0 / np.sqrt(num_nodes)
    w2 = jax.random.uniform(k2, (num_nodes,), jnp.float32, -lim2, lim2)

    lw = float(np.sqrt(6.0 / (num_nodes + c_in)))
    w = jax.random.uniform(k3, (num_nodes, c_in), jnp.float32, -lw, lw)
    lv = float(np.sqrt(6.0 / (tem_size + tem_size)))
    v = jax.random.uniform(k4, (tem_size, tem_size), jnp.float32, -lv, lv)

    b = jnp.zeros((tem_size, tem_size), jnp.float32)
    gamma = jnp.ones((tem_size,), jnp.float32)     # BatchNorm1d weight
    beta = jnp.zeros((tem_size,), jnp.float32)     # BatchNorm1d bias

    # Fixed block mask (hard-coded 60x60 in the original module).
    assert tem_size == 60, "hard-coded mask in TATT_1 requires tem_size == 60"
    A = np.zeros((60, 60), dtype=np.float32)
    A[:12, :12] = 1.0
    A[12:24, 12:24] = 1.0
    A[24:36, 24:36] = 1.0
    A[36:60, 36:60] = 1.0
    mask = jnp.asarray(-1e13 * (1.0 - A), jnp.float32)

    return dict(w1=w1, w2=w2, w=w, b=b, v=v, gamma=gamma, beta=beta, mask=mask)


if __name__ == "__main__":
    batch, c_in, num_nodes, tem_size = 2, 4, 16, 60

    key = jax.random.PRNGKey(0)
    kp, kx = jax.random.split(key)
    params = make_params(kp, c_in, num_nodes, tem_size)
    seq = jax.random.normal(kx, (batch, c_in, num_nodes, tem_size), jnp.float32)

    coefs = jax.block_until_ready(tatt1_forward(seq, params))
    ref = jax.block_until_ready(tatt1_reference(seq, params))

    assert coefs.shape == (batch, tem_size, tem_size)
    assert bool(jnp.all(jnp.isfinite(coefs)))
    # softmax rows sum to 1 (approx reciprocal in the epilogue -> loose tolerance)
    assert bool(jnp.allclose(jnp.sum(coefs, axis=-1), 1.0, atol=5e-3))
    # match the pure-JAX reference of the PyTorch forward
    assert float(jnp.max(jnp.abs(coefs - ref))) < 5e-3

    print("KERNEL_OK")
</pallas_src>

<mosaic_0001>
module attributes {stable_mosaic.version = 11 : i64} {
  func.func @tatt1_kernel(%arg0: i32, %arg1: memref<2x4x16x128xf32, #tpu.memory_space<vmem>>, %arg2: memref<1x1x16x1xf32, #tpu.memory_space<vmem>>, %arg3: memref<64x4xf32, #tpu.memory_space<vmem>>, %arg4: memref<64x128xf32, #tpu.memory_space<vmem>>, %arg5: memref<64x64xf32, #tpu.memory_space<vmem>>, %arg6: memref<1x128xf32, #tpu.memory_space<vmem>>, %arg7: memref<1x128xf32, #tpu.memory_space<vmem>>, %arg8: memref<64x128xf32, #tpu.memory_space<vmem>>, %arg9: memref<2x64x128xf32, #tpu.memory_space<vmem>>) attributes {dimension_semantics = [#tpu.dimension_semantics<arbitrary>], iteration_bounds = array<i64: 1>, scalar_prefetch = 0 : i64, scratch_operands = 0 : i64, tpu.core_type = #tpu.core_type<tc>, window_params = [{pipeline_mode = #tpu.pipeline_mode<synchronous>, transform_indices = @transform_0, window_bounds = array<i64: 2, 4, 16, 128>}, {pipeline_mode = #tpu.pipeline_mode<synchronous>, transform_indices = @transform_1, window_bounds = array<i64: 1, 1, 16, 1>}, {pipeline_mode = #tpu.pipeline_mode<synchronous>, transform_indices = @transform_2, window_bounds = array<i64: 64, 4>}, {pipeline_mode = #tpu.pipeline_mode<synchronous>, transform_indices = @transform_3, window_bounds = array<i64: 64, 128>}, {pipeline_mode = #tpu.pipeline_mode<synchronous>, transform_indices = @transform_4, window_bounds = array<i64: 64, 64>}, {pipeline_mode = #tpu.pipeline_mode<synchronous>, transform_indices = @transform_5, window_bounds = array<i64: 1, 128>}, {pipeline_mode = #tpu.pipeline_mode<synchronous>, transform_indices = @transform_6, window_bounds = array<i64: 1, 128>}, {pipeline_mode = #tpu.pipeline_mode<synchronous>, transform_indices = @transform_7, window_bounds = array<i64: 64, 128>}, {pipeline_mode = #tpu.pipeline_mode<synchronous>, transform_indices = @transform_8, window_bounds = array<i64: 2, 64, 128>}]} {
    %c0 = arith.constant 0 : index
    %c0_0 = arith.constant 0 : index
    %c0_1 = arith.constant 0 : index
    %c0_2 = arith.constant 0 : index
    %0 = vector.load %arg1[%c0, %c0_0, %c0_1, %c0_2] : memref<2x4x16x128xf32, #tpu.memory_space<vmem>>, vector<2x4x16x128xf32>
    %c0_3 = arith.constant 0 : index
    %c0_4 = arith.constant 0 : index
    %c0_5 = arith.constant 0 : index
    %c0_6 = arith.constant 0 : index
    %1 = vector.load %arg2[%c0_3, %c0_4, %c0_5, %c0_6] : memref<1x1x16x1xf32, #tpu.memory_space<vmem>>, vector<1x1x16x1xf32>
    %2 = vector.broadcast %1 : vector<1x1x16x1xf32> to vector<2x4x16x128xf32>
    %3 = arith.mulf %0, %2 : vector<2x4x16x128xf32>
    %cst = arith.constant dense<0.000000e+00> : vector<2x4x128xf32>
    %4 = vector.multi_reduction <add>, %3, %cst [2] : vector<2x4x16x128xf32> to vector<2x4x128xf32>
    %5 = vector.shape_cast %0 : vector<2x4x16x128xf32> to vector<2x64x128xf32>
    %c0_7 = arith.constant 0 : index
    %c0_8 = arith.constant 0 : index
    %6 = vector.load %arg3[%c0_7, %c0_8] : memref<64x4xf32, #tpu.memory_space<vmem>>, vector<64x4xf32>
    "tpu.trace_start"() <{level = 10 : i32, message = "bkt,kc->btc"}> : () -> ()
    %cst_9 = arith.constant dense<0.000000e+00> : vector<2x128x4xf32>
    %7 = tpu.matmul %5, %6, %cst_9 {dimension_numbers = #tpu.dot_dimension_numbers<[1], [0], [0, 2], [1], [0, 0, 0, 2, 1, 1], [], []>} : vector<2x64x128xf32>, vector<64x4xf32>, vector<2x128x4xf32> -> vector<2x128x4xf32>
    "tpu.trace_stop"() : () -> ()
    %8 = vector.extract_strided_slice %7 {offsets = [0, 0, 0], sizes = [2, 64, 4], strides = [1, 1, 1]} : vector<2x128x4xf32> to vector<2x64x4xf32>
    %9 = vector.extract_strided_slice %8 {offsets = [0, 0, 0], sizes = [2, 64, 1], strides = [1, 1, 1]} : vector<2x64x4xf32> to vector<2x64x1xf32>
    %10 = vector.extract_strided_slice %4 {offsets = [0, 0, 0], sizes = [2, 1, 128], strides = [1, 1, 1]} : vector<2x4x128xf32> to vector<2x1x128xf32>
    %11 = vector.broadcast %9 : vector<2x64x1xf32> to vector<2x64x128xf32>
    %12 = vector.broadcast %10 : vector<2x1x128xf32> to vector<2x64x128xf32>
    %13 = arith.mulf %11, %12 : vector<2x64x128xf32>
    %14 = vector.extract_strided_slice %8 {offsets = [0, 0, 1], sizes = [2, 64, 1], strides = [1, 1, 1]} : vector<2x64x4xf32> to vector<2x64x1xf32>
    %15 = vector.extract_strided_slice %4 {offsets = [0, 1, 0], sizes = [2, 1, 128], strides = [1, 1, 1]} : vector<2x4x128xf32> to vector<2x1x128xf32>
    %16 = vector.broadcast %14 : vector<2x64x1xf32> to vector<2x64x128xf32>
    %17 = vector.broadcast %15 : vector<2x1x128xf32> to vector<2x64x128xf32>
    %18 = arith.mulf %16, %17 : vector<2x64x128xf32>
    %19 = arith.addf %13, %18 : vector<2x64x128xf32>
    %20 = vector.extract_strided_slice %8 {offsets = [0, 0, 2], sizes = [2, 64, 1], strides = [1, 1, 1]} : vector<2x64x4xf32> to vector<2x64x1xf32>
    %21 = vector.extract_strided_slice %4 {offsets = [0, 2, 0], sizes = [2, 1, 128], strides = [1, 1, 1]} : vector<2x4x128xf32> to vector<2x1x128xf32>
    %22 = vector.broadcast %20 : vector<2x64x1xf32> to vector<2x64x128xf32>
    %23 = vector.broadcast %21 : vector<2x1x128xf32> to vector<2x64x128xf32>
    %24 = arith.mulf %22, %23 : vector<2x64x128xf32>
    %25 = arith.addf %19, %24 : vector<2x64x128xf32>
    %26 = vector.extract_strided_slice %8 {offsets = [0, 0, 3], sizes = [2, 64, 1], strides = [1, 1, 1]} : vector<2x64x4xf32> to vector<2x64x1xf32>
    %27 = vector.extract_strided_slice %4 {offsets = [0, 3, 0], sizes = [2, 1, 128], strides = [1, 1, 1]} : vector<2x4x128xf32> to vector<2x1x128xf32>
    %28 = vector.broadcast %26 : vector<2x64x1xf32> to vector<2x64x128xf32>
    %29 = vector.broadcast %27 : vector<2x1x128xf32> to vector<2x64x128xf32>
    %30 = arith.mulf %28, %29 : vector<2x64x128xf32>
    %31 = arith.addf %25, %30 : vector<2x64x128xf32>
    %c0_10 = arith.constant 0 : index
    %c0_11 = arith.constant 0 : index
    %32 = vector.load %arg4[%c0_10, %c0_11] : memref<64x128xf32, #tpu.memory_space<vmem>>, vector<64x128xf32>
    %33 = vector.shape_cast %32 : vector<64x128xf32> to vector<1x64x128xf32>
    %34 = vector.broadcast %33 : vector<1x64x128xf32> to vector<2x64x128xf32>
    %35 = arith.addf %31, %34 : vector<2x64x128xf32>
    %36 = arith.negf %35 : vector<2x64x128xf32>
    %37 = math.exp %36 : vector<2x64x128xf32>
    %cst_12 = arith.constant 1.000000e+00 : f32
    %38 = vector.broadcast %cst_12 : f32 to vector<2x64x128xf32>
    %39 = arith.addf %38, %37 : vector<2x64x128xf32>
    %40 = arith.divf %38, %39 : vector<2x64x128xf32>
    %c0_13 = arith.constant 0 : index
    %c0_14 = arith.constant 0 : index
    %41 = vector.load %arg5[%c0_13, %c0_14] : memref<64x64xf32, #tpu.memory_space<vmem>>, vector<64x64xf32>
    %42 = vector.extract_strided_slice %40 {offsets = [0, 0, 0], sizes = [1, 64, 128], strides = [1, 1, 1]} : vector<2x64x128xf32> to vector<1x64x128xf32>
    %43 = vector.shape_cast %42 : vector<1x64x128xf32> to vector<64x128xf32>
    %cst_15 = arith.constant dense<0.000000e+00> : vector<64x128xf32>
    %44 = tpu.matmul %41, %43, %cst_15 {dimension_numbers = #tpu.dot_dimension_numbers<[1], [0], [0], [1], [0, 0, 1, 1], [], []>} : vector<64x64xf32>, vector<64x128xf32>, vector<64x128xf32> -> vector<64x128xf32>
    %45 = vector.shape_cast %44 : vector<64x128xf32> to vector<1x64x128xf32>
    %46 = vector.extract_strided_slice %40 {offsets = [1, 0, 0], sizes = [1, 64, 128], strides = [1, 1, 1]} : vector<2x64x128xf32> to vector<1x64x128xf32>
    %47 = vector.shape_cast %46 : vector<1x64x128xf32> to vector<64x128xf32>
    %cst_16 = arith.constant dense<0.000000e+00> : vector<64x128xf32>
    %48 = tpu.matmul %41, %47, %cst_16 {dimension_numbers = #tpu.dot_dimension_numbers<[1], [0], [0], [1], [0, 0, 1, 1], [], []>} : vector<64x64xf32>, vector<64x128xf32>, vector<64x128xf32> -> vector<64x128xf32>
    %49 = vector.shape_cast %48 : vector<64x128xf32> to vector<1x64x128xf32>
    %50 = tpu.concatenate %45, %49 in 0 : vector<1x64x128xf32>, vector<1x64x128xf32> -> vector<2x64x128xf32>
    %51 = vector.shape_cast %50 : vector<2x64x128xf32> to vector<128x128xf32>
    %cst_17 = arith.constant dense<0.000000e+00> : vector<128xf32>
    %52 = vector.multi_reduction <add>, %51, %cst_17 [0] : vector<128x128xf32> to vector<128xf32>
    %53 = vector.shape_cast %52 : vector<128xf32> to vector<1x128xf32>
    %cst_18 = arith.constant 0.00833333377 : f32
    %54 = vector.broadcast %cst_18 : f32 to vector<1x128xf32>
    %55 = arith.mulf %53, %54 : vector<1x128xf32>
    %56 = vector.broadcast %55 : vector<1x128xf32> to vector<128x128xf32>
    %57 = arith.subf %51, %56 : vector<128x128xf32>
    %58 = tpu.iota {dimensions = array<i32: 0>} : vector<128x128xi32>
    %c64_i32 = arith.constant 64 : i32
    %c0_i32 = arith.constant 0 : i32
    %59 = arith.cmpi eq, %c64_i32, %c0_i32 : i32
    %c1_i32 = arith.constant 1 : i32
    %60 = arith.select %59, %c1_i32, %c64_i32 : i32
    %61 = vector.broadcast %60 : i32 to vector<128x128xi32>
    %62 = arith.remsi %58, %61 : vector<128x128xi32>
    %c0_i32_19 = arith.constant 0 : i32
    %63 = vector.broadcast %c0_i32_19 : i32 to vector<128x128xi32>
    %64 = arith.cmpi ne, %62, %63 : vector<128x128xi32>
    %c0_i32_20 = arith.constant 0 : i32
    %65 = vector.broadcast %c0_i32_20 : i32 to vector<128x128xi32>
    %66 = arith.cmpi slt, %62, %65 : vector<128x128xi32>
    %c0_i32_21 = arith.constant 0 : i32
    %67 = arith.cmpi slt, %60, %c0_i32_21 : i32
    %68 = vector.broadcast %67 : i1 to vector<128x128xi1>
    %69 = vector.broadcast %68 : vector<128x128xi1> to vector<128x128xi1>
    %70 = arith.xori %66, %69 : vector<128x128xi1>
    %71 = arith.andi %70, %64 : vector<128x128xi1>
    %72 = vector.broadcast %60 : i32 to vector<128x128xi32>
    %73 = arith.addi %62, %72 : vector<128x128xi32>
    %74 = arith.select %71, %73, %62 : vector<128x128xi1>, vector<128x128xi32>
    %c60_i32 = arith.constant 60 : i32
    %75 = vector.broadcast %c60_i32 : i32 to vector<128x128xi32>
    %76 = arith.cmpi slt, %74, %75 : vector<128x128xi32>
    %77 = arith.extui %76 : vector<128x128xi1> to vector<128x128xi32>
    %78 = arith.sitofp %77 : vector<128x128xi32> to vector<128x128xf32>
    %79 = arith.mulf %57, %57 : vector<128x128xf32>
    %80 = arith.mulf %79, %78 : vector<128x128xf32>
    %cst_22 = arith.constant dense<0.000000e+00> : vector<128xf32>
    %81 = vector.multi_reduction <add>, %80, %cst_22 [0] : vector<128x128xf32> to vector<128xf32>
    %82 = vector.shape_cast %81 : vector<128xf32> to vector<1x128xf32>
    %cst_23 = arith.constant 0.00833333377 : f32
    %83 = vector.broadcast %cst_23 : f32 to vector<1x128xf32>
    %84 = arith.mulf %82, %83 : vector<1x128xf32>
    %c0_24 = arith.constant 0 : index
    %c0_25 = arith.constant 0 : index
    %85 = vector.load %arg6[%c0_24, %c0_25] : memref<1x128xf32, #tpu.memory_space<vmem>>, vector<1x128xf32>
    %86 = vector.broadcast %85 : vector<1x128xf32> to vector<128x128xf32>
    %87 = arith.mulf %86, %57 : vector<128x128xf32>
    %cst_26 = arith.constant 9.99999974E-6 : f32
    %88 = vector.broadcast %cst_26 : f32 to vector<1x128xf32>
    %89 = arith.addf %84, %88 : vector<1x128xf32>
    %90 = math.rsqrt %89 : vector<1x128xf32>
    %91 = vector.broadcast %90 : vector<1x128xf32> to vector<128x128xf32>
    %92 = arith.mulf %87, %91 : vector<128x128xf32>
    %c0_27 = arith.constant 0 : index
    %c0_28 = arith.constant 0 : index
    %93 = vector.load %arg7[%c0_27, %c0_28] : memref<1x128xf32, #tpu.memory_space<vmem>>, vector<1x128xf32>
    %94 = vector.broadcast %93 : vector<1x128xf32> to vector<128x128xf32>
    %95 = arith.addf %92, %94 : vector<128x128xf32>
    %96 = vector.shape_cast %95 : vector<128x128xf32> to vector<2x64x128xf32>
    %c0_29 = arith.constant 0 : index
    %c0_30 = arith.constant 0 : index
    %97 = vector.load %arg8[%c0_29, %c0_30] : memref<64x128xf32, #tpu.memory_space<vmem>>, vector<64x128xf32>
    %98 = vector.shape_cast %97 : vector<64x128xf32> to vector<1x64x128xf32>
    %99 = vector.broadcast %98 : vector<1x64x128xf32> to vector<2x64x128xf32>
    %100 = arith.addf %96, %99 : vector<2x64x128xf32>
    %cst_31 = arith.constant dense<0xFF800000> : vector<2x64xf32>
    %101 = vector.multi_reduction <maximumf>, %100, %cst_31 [2] : vector<2x64x128xf32> to vector<2x64xf32>
    %102 = vector.shape_cast %101 : vector<2x64xf32> to vector<2x64x1xf32>
    %103 = vector.broadcast %102 : vector<2x64x1xf32> to vector<2x64x128xf32>
    %104 = arith.subf %100, %103 : vector<2x64x128xf32>
    %105 = math.exp %104 : vector<2x64x128xf32>
    %cst_32 = arith.constant dense<0.000000e+00> : vector<2x64xf32>
    %106 = vector.multi_reduction <add>, %105, %cst_32 [2] : vector<2x64x128xf32> to vector<2x64xf32>
    %107 = vector.shape_cast %106 : vector<2x64xf32> to vector<2x64x1xf32>
    %108 = tpu.reciprocal %107 {approx = true} : vector<2x64x1xf32> -> vector<2x64x1xf32>
    %109 = vector.broadcast %108 : vector<2x64x1xf32> to vector<2x64x128xf32>
    %110 = arith.mulf %105, %109 : vector<2x64x128xf32>
    %c0_33 = arith.constant 0 : index
    %c0_34 = arith.constant 0 : index
    %c0_35 = arith.constant 0 : index
    %111 = vector.load %arg9[%c0_33, %c0_34, %c0_35] : memref<2x64x128xf32, #tpu.memory_space<vmem>>, vector<2x64x128xf32>
    tpu.vector_store %arg9[%c0_33, %c0_34, %c0_35], %110 {strides = array<i32>} : memref<2x64x128xf32, #tpu.memory_space<vmem>>, vector<2x64x128xf32>,
    return
  }
  func.func @transform_0(%arg0: i32) -> (i32, i32, i32, i32) {
    %c0_i32 = arith.constant 0 : i32
    %c0_i32_0 = arith.constant 0 : i32
    %c0_i32_1 = arith.constant 0 : i32
    %c0_i32_2 = arith.constant 0 : i32
    %c0_i32_3 = arith.constant 0 : i32
    return %c0_i32, %c0_i32_0, %c0_i32_1, %c0_i32_2 : i32, i32, i32, i32
  }
  func.func @transform_1(%arg0: i32) -> (i32, i32, i32, i32) {
    %c0_i32 = arith.constant 0 : i32
    %c0_i32_0 = arith.constant 0 : i32
    %c0_i32_1 = arith.constant 0 : i32
    %c0_i32_2 = arith.constant 0 : i32
    %c0_i32_3 = arith.constant 0 : i32
    return %c0_i32, %c0_i32_0, %c0_i32_1, %c0_i32_2 : i32, i32, i32, i32
  }
  func.func @transform_2(%arg0: i32) -> (i32, i32) {
    %c0_i32 = arith.constant 0 : i32
    %c0_i32_0 = arith.constant 0 : i32
    %c0_i32_1 = arith.constant 0 : i32
    return %c0_i32, %c0_i32_0 : i32, i32
  }
  func.func @transform_3(%arg0: i32) -> (i32, i32) {
    %c0_i32 = arith.constant 0 : i32
    %c0_i32_0 = arith.constant 0 : i32
    %c0_i32_1 = arith.constant 0 : i32
    return %c0_i32, %c0_i32_0 : i32, i32
  }
  func.func @transform_4(%arg0: i32) -> (i32, i32) {
    %c0_i32 = arith.constant 0 : i32
    %c0_i32_0 = arith.constant 0 : i32
    %c0_i32_1 = arith.constant 0 : i32
    return %c0_i32, %c0_i32_0 : i32, i32
  }
  func.func @transform_5(%arg0: i32) -> (i32, i32) {
    %c0_i32 = arith.constant 0 : i32
    %c0_i32_0 = arith.constant 0 : i32
    %c0_i32_1 = arith.constant 0 : i32
    return %c0_i32, %c0_i32_0 : i32, i32
  }
  func.func @transform_6(%arg0: i32) -> (i32, i32) {
    %c0_i32 = arith.constant 0 : i32
    %c0_i32_0 = arith.constant 0 : i32
    %c0_i32_1 = arith.constant 0 : i32
    return %c0_i32, %c0_i32_0 : i32, i32
  }
  func.func @transform_7(%arg0: i32) -> (i32, i32) {
    %c0_i32 = arith.constant 0 : i32
    %c0_i32_0 = arith.constant 0 : i32
    %c0_i32_1 = arith.constant 0 : i32
    return %c0_i32, %c0_i32_0 : i32, i32
  }
  func.func @transform_8(%arg0: i32) -> (i32, i32, i32) {
    %c0_i32 = arith.constant 0 : i32
    %c0_i32_0 = arith.constant 0 : i32
    %c0_i32_1 = arith.constant 0 : i32
    %c0_i32_2 = arith.constant 0 : i32
    return %c0_i32, %c0_i32_0, %c0_i32_1 : i32, i32, i32
  }
}

</mosaic_0001>

<llo_original>
// kernel: tpu_custom_call.1
$region0: #{tpu_custom_call.1}
  #allocation0 [shape = 'u32[]', space=smem, size = 0x4, offset = 0x4, fixed_abs, tag = 'smem constant byte address 0x4 - core index']
  #allocation1 [shape = 'u32[144,128]{1,0:T(1,128)}', space=vmem, size = 0x12000, scoped, tag = 'internal scratch']
  %s0 = inlined_call_operand.hbm [shape: f32[2,4,16,128], index: 0, kind: input, shape index: {}]
  %s1 = inlined_call_operand.vmem [shape: f32[1,1,16,1], index: 1, kind: input, shape index: {}]
  %s2 = inlined_call_operand.vmem [shape: f32[64,4], index: 2, kind: input, shape index: {}]
  %s3 = inlined_call_operand.vmem [shape: f32[64,128], index: 3, kind: input, shape index: {}]
  %s4 = inlined_call_operand.hbm [shape: f32[64,64], index: 4, kind: input, shape index: {}]
  %s5 = inlined_call_operand.vmem [shape: f32[1,128], index: 5, kind: input, shape index: {}]
  %s6 = inlined_call_operand.vmem [shape: f32[1,128], index: 6, kind: input, shape index: {}]
  %s7 = inlined_call_operand.hbm [shape: f32[64,128], index: 7, kind: input, shape index: {}]
  %s8 = inlined_call_operand.hbm [shape: f32[2,64,128], index: 8, kind: output, shape index: {}]
  %s9 = sld [smem:[#allocation0]]
  $region54: #{tpu_custom_call.1} parent=0
    _
  %s11 = ssub.s32 1, %s9
  %s12 = scalar_select 0, %s11, %s9
  $region1: #{tpu_custom_call.1} parent=0
    #allocation2 [shape = 'u8[65536]{0}', space=vmem, size = 0x10000, scoped, tag = 'input window, operand 0, single buffered']
    #allocation3 [shape = 's32[1]{0}', space=sflag, size = 0x4, scoped, tag = 'scoped memory for tpu_custom_call.1']
    #allocation4 [shape = 's32[1]{0}', space=sflag, size = 0x4, scoped, tag = 'scoped memory for tpu_custom_call.1']
    #allocation5 [shape = 'u8[32768]{0}', space=vmem, size = 0x8000, scoped, tag = 'input window, operand 4, single buffered']
    #allocation6 [shape = 's32[1]{0}', space=sflag, size = 0x4, scoped, tag = 'scoped memory for tpu_custom_call.1']
    #allocation7 [shape = 'u8[32768]{0}', space=vmem, size = 0x8000, scoped, tag = 'input window, operand 7, single buffered']
    #allocation8 [shape = 'u8[65536]{0}', space=vmem, size = 0x10000, scoped, tag = 'output window, operand 0, single buffered']
    %13 = vsyncpa [#allocation3], 0
    %14 = vsyncpa [#allocation6], 0
    %15 = vsyncpa [#allocation4], 0
    // Predicated region
    $region2: #{tpu_custom_call.1} parent=1 // pred_check
      _
    $region3: #{tpu_custom_call.1} parent=1 // pred_check_branch
      %17 = sbr.rel (0) target = $region5
    $region4: #{tpu_custom_call.1} parent=1 // pred_region
      %s19 = ssub.s32 2048, 2048
      %20 = vsyncadd [#allocation3], %s19
      %s21 = sshll.u32 [#allocation2], 4
      %s22 = int_to_ptr.vmem [resolvable:$true] %s21
      %27 = dma.hbm_to_vmem [thread:$0]  %s0, 2048, %s22, [#allocation3], 128, 128, 8
    $region5: #{tpu_custom_call.1} parent=1 // pred_fallthru
      _
    // Predicated region
    $region6: #{tpu_custom_call.1} parent=1 // pred_check
      _
    $region7: #{tpu_custom_call.1} parent=1 // pred_check_branch
      %29 = sbr.rel (0) target = $region9
    $region8: #{tpu_custom_call.1} parent=1 // pred_region
      _
    $region9: #{tpu_custom_call.1} parent=1 // pred_fallthru
      _
    // Predicated region
    $region10: #{tpu_custom_call.1} parent=1 // pred_check
      _
    $region11: #{tpu_custom_call.1} parent=1 // pred_check_branch
      %31 = sbr.rel (0) target = $region13
    $region12: #{tpu_custom_call.1} parent=1 // pred_region
      _
    $region13: #{tpu_custom_call.1} parent=1 // pred_fallthru
      _
    // Predicated region
    $region14: #{tpu_custom_call.1} parent=1 // pred_check
      _
    $region15: #{tpu_custom_call.1} parent=1 // pred_check_branch
      %33 = sbr.rel (0) target = $region17
    $region16: #{tpu_custom_call.1} parent=1 // pred_region
      _
    $region17: #{tpu_custom_call.1} parent=1 // pred_fallthru
      _
    // Predicated region
    $region18: #{tpu_custom_call.1} parent=1 // pred_check
      _
    $region19: #{tpu_custom_call.1} parent=1 // pred_check_branch
      %35 = sbr.rel (0) target = $region21
    $region20: #{tpu_custom_call.1} parent=1 // pred_region
      %s37 = ssub.s32 1024, 1024
      %38 = vsyncadd [#allocation6], %s37
      %s39 = sshll.u32 [#allocation5], 4
      %s40 = int_to_ptr.vmem [resolvable:$true] %s39
      %45 = dma.hbm_to_vmem [thread:$0]  %s4, 1024, %s40, [#allocation6], 128, 128, 8
    $region21: #{tpu_custom_call.1} parent=1 // pred_fallthru
      _
    // Predicated region
    $region22: #{tpu_custom_call.1} parent=1 // pred_check
      _
    $region23: #{tpu_custom_call.1} parent=1 // pred_check_branch
      %47 = sbr.rel (0) target = $region25
    $region24: #{tpu_custom_call.1} parent=1 // pred_region
      _
    $region25: #{tpu_custom_call.1} parent=1 // pred_fallthru
      _
    // Predicated region
    $region26: #{tpu_custom_call.1} parent=1 // pred_check
      _
    $region27: #{tpu_custom_call.1} parent=1 // pred_check_branch
      %49 = sbr.rel (0) target = $region29
    $region28: #{tpu_custom_call.1} parent=1 // pred_region
      _
    $region29: #{tpu_custom_call.1} parent=1 // pred_fallthru
      _
    // Predicated region
    $region30: #{tpu_custom_call.1} parent=1 // pred_check
      _
    $region31: #{tpu_custom_call.1} parent=1 // pred_check_branch
      %51 = sbr.rel (0) target = $region33
    $region32: #{tpu_custom_call.1} parent=1 // pred_region
      %s53 = ssub.s32 1024, 1024
      %54 = vsyncadd [#allocation6], %s53
      %s55 = sshll.u32 [#allocation7], 4
      %s56 = int_to_ptr.vmem [resolvable:$true] %s55
      %61 = dma.hbm_to_vmem [thread:$0]  %s7, 1024, %s56, [#allocation6], 128, 128, 8
    $region33: #{tpu_custom_call.1} parent=1 // pred_fallthru
      _
    // Predicated region
    $region34: #{tpu_custom_call.1} parent=1 // pred_check
      _
    $region35: #{tpu_custom_call.1} parent=1 // pred_check_branch
      %63 = sbr.rel (0) target = $region37
    $region36: #{tpu_custom_call.1} parent=1 // pred_region
      %64 = dma.done [#allocation3], 2048
    $region37: #{tpu_custom_call.1} parent=1 // pred_fallthru
      _
    // Predicated region
    $region38: #{tpu_custom_call.1} parent=1 // pred_check
      _
    $region39: #{tpu_custom_call.1} parent=1 // pred_check_branch
      %66 = sbr.rel (0) target = $region41
    $region40: #{tpu_custom_call.1} parent=1 // pred_region
      %67 = dma.done [#allocation6], 1024
    $region41: #{tpu_custom_call.1} parent=1 // pred_fallthru
      _
    // Predicated region
    $region42: #{tpu_custom_call.1} parent=1 // pred_check
      _
    $region43: #{tpu_custom_call.1} parent=1 // pred_check_branch
      %69 = sbr.rel (0) target = $region45
    $region44: #{tpu_custom_call.1} parent=1 // pred_region
      %70 = dma.done [#allocation6], 1024
    $region45: #{tpu_custom_call.1} parent=1 // pred_fallthru
      _
    %v71 = vld [vmem:[#allocation2] sm:$0xff]
    %v72 = vld [vmem:[#allocation2 + $0x8] sm:$0xff]
    %v73 = vld [vmem:[#allocation2 + $0x10] sm:$0xff]
    %v74 = vld [vmem:[#allocation2 + $0x18] sm:$0xff]
    %v75 = vld [vmem:[#allocation2 + $0x20] sm:$0xff]
    %v76 = vld [vmem:[#allocation2 + $0x28] sm:$0xff]
    %v77 = vld [vmem:[#allocation2 + $0x30] sm:$0xff]
    %v78 = vld [vmem:[#allocation2 + $0x38] sm:$0xff]
    %v79 = vld [vmem:[#allocation2 + $0x40] sm:$0xff]
    %v80 = vld [vmem:[#allocation2 + $0x48] sm:$0xff]
    %v81 = vld [vmem:[#allocation2 + $0x50] sm:$0xff]
    %v82 = vld [vmem:[#allocation2 + $0x58] sm:$0xff]
    %v83 = vld [vmem:[#allocation2 + $0x60] sm:$0xff]
    %v84 = vld [vmem:[#allocation2 + $0x68] sm:$0xff]
    %v85 = vld [vmem:[#allocation2 + $0x70] sm:$0xff]
    %v86 = vld [vmem:[#allocation2 + $0x78] sm:$0xff]
    %v87 = vld [vmem:[%s1] sm:$0xff]
    %v88 = vld [vmem:[%s1 + $0x8] sm:$0xff]
    %90 = vset.pattern.permute.xlu0 0
    %91 = vperm.xlu0 %90, %v87
    %v92 = vpop.permute.xlu0 %91
    %95 = vset.pattern.permute.xlu0 0
    %96 = vperm.xlu0 %95, %v88
    %v97 = vpop.permute.xlu0 %96
    %v99 = vmul.f32 %v71, %v92
    %v100 = vmul.f32 %v72, %v97
    %v101 = vmul.f32 %v73, %v92
    %v102 = vmul.f32 %v74, %v97
    %v103 = vmul.f32 %v75, %v92
    %v104 = vmul.f32 %v76, %v97
    %v105 = vmul.f32 %v77, %v92
    %v106 = vmul.f32 %v78, %v97
    %v107 = vmul.f32 %v79, %v92
    %v108 = vmul.f32 %v80, %v97
    %v109 = vmul.f32 %v81, %v92
    %v110 = vmul.f32 %v82, %v97
    %v111 = vmul.f32 %v83, %v92
    %v112 = vmul.f32 %v84, %v97
    %v113 = vmul.f32 %v85, %v92
    %v114 = vmul.f32 %v86, %v97
    %v115 = vadd.f32 %v99, %v100
    %v116 = vrot.slane %v115, 4
    %v117 = vadd.f32 %v115, %v116
    %v118 = vrot.slane %v117, 2
    %v119 = vadd.f32 %v117, %v118
    %v120 = vrot.slane %v119, 1
    %v121 = vadd.f32 %v119, %v120
    %v122 = vadd.f32 %v101, %v102
    %v123 = vrot.slane %v122, 4
    %v124 = vadd.f32 %v122, %v123
    %v125 = vrot.slane %v124, 2
    %v126 = vadd.f32 %v124, %v125
    %v127 = vrot.slane %v126, 1
    %v128 = vadd.f32 %v126, %v127
    %v129 = vadd.f32 %v103, %v104
    %v130 = vrot.slane %v129, 4
    %v131 = vadd.f32 %v129, %v130
    %v132 = vrot.slane %v131, 2
    %v133 = vadd.f32 %v131, %v132
    %v134 = vrot.slane %v133, 1
    %v135 = vadd.f32 %v133, %v134
    %v136 = vadd.f32 %v105, %v106
    %v137 = vrot.slane %v136, 4
    %v138 = vadd.f32 %v136, %v137
    %v139 = vrot.slane %v138, 2
    %v140 = vadd.f32 %v138, %v139
    %v141 = vrot.slane %v140, 1
    %v142 = vadd.f32 %v140, %v141
    %v143 = vadd.f32 %v107, %v108
    %v144 = vrot.slane %v143, 4
    %v145 = vadd.f32 %v143, %v144
    %v146 = vrot.slane %v145, 2
    %v147 = vadd.f32 %v145, %v146
    %v148 = vrot.slane %v147, 1
    %v149 = vadd.f32 %v147, %v148
    %v150 = vadd.f32 %v109, %v110
    %v151 = vrot.slane %v150, 4
    %v152 = vadd.f32 %v150, %v151
    %v153 = vrot.slane %v152, 2
    %v154 = vadd.f32 %v152, %v153
    %v155 = vrot.slane %v154, 1
    %v156 = vadd.f32 %v154, %v155
    %v157 = vadd.f32 %v111, %v112
    %v158 = vrot.slane %v157, 4
    %v159 = vadd.f32 %v157, %v158
    %v160 = vrot.slane %v159, 2
    %v161 = vadd.f32 %v159, %v160
    %v162 = vrot.slane %v161, 1
    %v163 = vadd.f32 %v161, %v162
    %v164 = vadd.f32 %v113, %v114
    %v165 = vrot.slane %v164, 4
    %v166 = vadd.f32 %v164, %v165
    %v167 = vrot.slane %v166, 2
    %v168 = vadd.f32 %v166, %v167
    %v169 = vrot.slane %v168, 1
    %v170 = vadd.f32 %v168, %v169
    %v171 = vld [vmem:[%s2] sm:$0xff]
    %v172 = vld [vmem:[%s2 + $0x8] sm:$0xff]
    %v173 = vld [vmem:[%s2 + $0x10] sm:$0xff]
    %v174 = vld [vmem:[%s2 + $0x18] sm:$0xff]
    %v175 = vld [vmem:[%s2 + $0x20] sm:$0xff]
    %v176 = vld [vmem:[%s2 + $0x28] sm:$0xff]
    %v177 = vld [vmem:[%s2 + $0x30] sm:$0xff]
    %v178 = vld [vmem:[%s2 + $0x38] sm:$0xff]
    %179 = vxpose.xlu0.b32.start [1/16] %v71, 128
    %180 = vxpose.xlu0.b32.cont [2/16] %v72, 128
    %181 = vxpose.xlu0.b32.cont [3/16] %v73, 128
    %182 = vxpose.xlu0.b32.cont [4/16] %v74, 128
    %183 = vxpose.xlu0.b32.cont [5/16] %v75, 128
    %184 = vxpose.xlu0.b32.cont [6/16] %v76, 128
    %185 = vxpose.xlu0.b32.cont [7/16] %v77, 128
    %186 = vxpose.xlu0.b32.cont [8/16] %v78, 128
    %187 = vxpose.xlu0.b32.cont [9/16] 0.0, 128
    %188 = vxpose.xlu0.b32.cont [10/16] 0.0, 128
    %189 = vxpose.xlu0.b32.cont [11/16] 0.0, 128
    %190 = vxpose.xlu0.b32.cont [12/16] 0.0, 128
    %191 = vxpose.xlu0.b32.cont [13/16] 0.0, 128
    %192 = vxpose.xlu0.b32.cont [14/16] 0.0, 128
    %193 = vxpose.xlu0.b32.cont [15/16] 0.0, 128
    %194 = vxpose.xlu0.b32.end [16/16] 0.0, 128
    %v195 = vpop.trf.xlu0
    %v196 = vpop.trf.xlu0
    %v197 = vpop.trf.xlu0
    %v198 = vpop.trf.xlu0
    %v199 = vpop.trf.xlu0
    %v200 = vpop.trf.xlu0
    %v201 = vpop.trf.xlu0
    %v202 = vpop.trf.xlu0
    %v203 = vpop.trf.xlu0
    %v204 = vpop.trf.xlu0
    %v205 = vpop.trf.xlu0
    %v206 = vpop.trf.xlu0
    %v207 = vpop.trf.xlu0
    %v208 = vpop.trf.xlu0
    %v209 = vpop.trf.xlu0
    %v210 = vpop.trf.xlu0
    %211 = vxpose.xlu0.b32.start [1/16] %v79, 128
    %212 = vxpose.xlu0.b32.cont [2/16] %v80, 128
    %213 = vxpose.xlu0.b32.cont [3/16] %v81, 128
    %214 = vxpose.xlu0.b32.cont [4/16] %v82, 128
    %215 = vxpose.xlu0.b32.cont [5/16] %v83, 128
    %216 = vxpose.xlu0.b32.cont [6/16] %v84, 128
    %217 = vxpose.xlu0.b32.cont [7/16] %v85, 128
    %218 = vxpose.xlu0.b32.cont [8/16] %v86, 128
    %219 = vxpose.xlu0.b32.cont [9/16] 0.0, 128
    %220 = vxpose.xlu0.b32.cont [10/16] 0.0, 128
    %221 = vxpose.xlu0.b32.cont [11/16] 0.0, 128
    %222 = vxpose.xlu0.b32.cont [12/16] 0.0, 128
    %223 = vxpose.xlu0.b32.cont [13/16] 0.0, 128
    %224 = vxpose.xlu0.b32.cont [14/16] 0.0, 128
    %225 = vxpose.xlu0.b32.cont [15/16] 0.0, 128
    %226 = vxpose.xlu0.b32.end [16/16] 0.0, 128
    %v227 = vpop.trf.xlu0
    %v228 = vpop.trf.xlu0
    %v229 = vpop.trf.xlu0
    %v230 = vpop.trf.xlu0
    %v231 = vpop.trf.xlu0
    %v232 = vpop.trf.xlu0
    %v233 = vpop.trf.xlu0
    %v234 = vpop.trf.xlu0
    %v235 = vpop.trf.xlu0
    %v236 = vpop.trf.xlu0
    %v237 = vpop.trf.xlu0
    %v238 = vpop.trf.xlu0
    %v239 = vpop.trf.xlu0
    %v240 = vpop.trf.xlu0
    %v241 = vpop.trf.xlu0
    %v242 = vpop.trf.xlu0
    %vm243 = vcmask 523264
    %v245 = vsel %vm243, %v195, 0
    %v248 = vsel %vm243, %v196, 0
    %v251 = vsel %vm243, %v197, 0
    %v254 = vsel %vm243, %v198, 0
    %v257 = vsel %vm243, %v199, 0
    %v260 = vsel %vm243, %v200, 0
    %v263 = vsel %vm243, %v201, 0
    %v266 = vsel %vm243, %v202, 0
    %v269 = vsel %vm243, %v203, 0
    %v272 = vsel %vm243, %v204, 0
    %v275 = vsel %vm243, %v205, 0
    %v278 = vsel %vm243, %v206, 0
    %v281 = vsel %vm243, %v207, 0
    %v284 = vsel %vm243, %v208, 0
    %v287 = vsel %vm243, %v209, 0
    %v290 = vsel %vm243, %v210, 0
    %v293 = vsel %vm243, %v227, 0
    %v296 = vsel %vm243, %v228, 0
    %v299 = vsel %vm243, %v229, 0
    %v302 = vsel %vm243, %v230, 0
    %v305 = vsel %vm243, %v231, 0
    %v308 = vsel %vm243, %v232, 0
    %v311 = vsel %vm243, %v233, 0
    %v314 = vsel %vm243, %v234, 0
    %v317 = vsel %vm243, %v235, 0
    %v320 = vsel %vm243, %v236, 0
    %v323 = vsel %vm243, %v237, 0
    %v326 = vsel %vm243, %v238, 0
    %v329 = vsel %vm243, %v239, 0
    %v332 = vsel %vm243, %v240, 0
    %v335 = vsel %vm243, %v241, 0
    %v338 = vsel %vm243, %v242, 0
    %340 = vmatprep.subr.mxu0 0.0
    %341 = vmatpush1.msra.mxu0 0.0
    %342 = vmatprep.subr.mxu0 0.0
    %343 = vmatpush1.msra.mxu0 0.0
    %344 = vmatprep.subr.mxu0 0.0
    %345 = vmatpush1.msra.mxu0 0.0
    %346 = vmatprep.subr.mxu0 0.0
    %347 = vmatpush1.msra.mxu0 0.0
    %348 = vmatprep.subr.mxu0 0.0
    %349 = vmatpush1.msra.mxu0 0.0
    %350 = vmatprep.subr.mxu0 0.0
    %351 = vmatpush1.msra.mxu0 0.0
    %352 = vmatprep.subr.mxu0 0.0
    %353 = vmatpush1.msra.mxu0 0.0
    %354 = vmatprep.subr.mxu0 0.0
    %355 = vmatpush1.msra.mxu0 0.0
    %356 = vmatprep.subr.mxu0 0.0
    %357 = vmatpush1.msra.mxu0 %v178
    %358 = vmatprep.subr.mxu0 0.0
    %359 = vmatpush1.msra.mxu0 %v177
    %360 = vmatprep.subr.mxu0 0.0
    %361 = vmatpush1.msra.mxu0 %v176
    %362 = vmatprep.subr.mxu0 0.0
    %363 = vmatpush1.msra.mxu0 %v175
    %364 = vmatprep.subr.mxu0 0.0
    %365 = vmatpush1.msra.mxu0 %v174
    %366 = vmatprep.subr.mxu0 0.0
    %367 = vmatpush1.msra.mxu0 %v173
    %368 = vmatprep.subr.mxu0 0.0
    %369 = vmatpush1.msra.mxu0 %v172
    %370 = vmatprep.subr.mxu0 0.0
    %371 = vmatpush1.msra.mxu0 %v171
    %372 = vmatprep.subr.mxu0 0.0
    %373 = vmatpush2.msra.mxu0 0.0
    %374 = vmatprep.subr.mxu0 0.0
    %375 = vmatpush2.msra.mxu0 0.0
    %376 = vmatprep.subr.mxu0 0.0
    %377 = vmatpush2.msra.mxu0 0.0
    %378 = vmatprep.subr.mxu0 0.0
    %379 = vmatpush2.msra.mxu0 0.0
    %380 = vmatprep.subr.mxu0 0.0
    %381 = vmatpush2.msra.mxu0 0.0
    %382 = vmatprep.subr.mxu0 0.0
    %383 = vmatpush2.msra.mxu0 0.0
    %384 = vmatprep.subr.mxu0 0.0
    %385 = vmatpush2.msra.mxu0 0.0
    %386 = vmatprep.subr.mxu0 0.0
    %387 = vmatpush2.msra.mxu0 0.0
    %388 = vmatprep.subr.mxu0 0.0
    %389 = vmatpush2.msra.mxu0 0.0
    %390 = vmatprep.subr.mxu0 0.0
    %391 = vmatpush2.msra.mxu0 0.0
    %392 = vmatprep.subr.mxu0 0.0
    %393 = vmatpush2.msra.mxu0 0.0
    %394 = vmatprep.subr.mxu0 0.0
    %395 = vmatpush2.msra.mxu0 0.0
    %396 = vmatprep.subr.mxu0 0.0
    %397 = vmatpush2.msra.mxu0 0.0
    %398 = vmatprep.subr.mxu0 0.0
    %399 = vmatpush2.msra.mxu0 0.0
    %400 = vmatprep.subr.mxu0 0.0
    %401 = vmatpush2.msra.mxu0 0.0
    %402 = vmatprep.subr.mxu0 0.0
    %403 = vmatpush2.msra.mxu0 0.0
    %404 = vmatprep.mubr.f32.mxu0 0.0
    %405 = vmatmul.mubr.f32.gmra.mxu0 %v245
    %v406 = vpop.f32.mrf.mxu0
    %v407 = vadd.f32 0.0, %v406
    %v408 = vpop.f32.mrf.mxu0
    %409 = vmatprep.mubr.f32.mxu0 0.0
    %410 = vmatmul.mubr.f32.gmra.mxu0 %v248
    %v411 = vpop.f32.mrf.mxu0
    %v412 = vadd.f32 0.0, %v411
    %v413 = vpop.f32.mrf.mxu0
    %414 = vmatprep.mubr.f32.mxu0 0.0
    %415 = vmatmul.mubr.f32.gmra.mxu0 %v251
    %v416 = vpop.f32.mrf.mxu0
    %v417 = vadd.f32 0.0, %v416
    %v418 = vpop.f32.mrf.mxu0
    %419 = vmatprep.mubr.f32.mxu0 0.0
    %420 = vmatmul.mubr.f32.gmra.mxu0 %v254
    %v421 = vpop.f32.mrf.mxu0
    %v422 = vadd.f32 0.0, %v421
    %v423 = vpop.f32.mrf.mxu0
    %424 = vmatprep.mubr.f32.mxu0 0.0
    %425 = vmatmul.mubr.f32.gmra.mxu0 %v257
    %v426 = vpop.f32.mrf.mxu0
    %v427 = vadd.f32 0.0, %v426
    %v428 = vpop.f32.mrf.mxu0
    %429 = vmatprep.mubr.f32.mxu0 0.0
    %430 = vmatmul.mubr.f32.gmra.mxu0 %v260
    %v431 = vpop.f32.mrf.mxu0
    %v432 = vadd.f32 0.0, %v431
    %v433 = vpop.f32.mrf.mxu0
    %434 = vmatprep.mubr.f32.mxu0 0.0
    %435 = vmatmul.mubr.f32.gmra.mxu0 %v263
    %v436 = vpop.f32.mrf.mxu0
    %v437 = vadd.f32 0.0, %v436
    %v438 = vpop.f32.mrf.mxu0
    %439 = vmatprep.mubr.f32.mxu0 0.0
    %440 = vmatmul.mubr.f32.gmra.mxu0 %v266
    %v441 = vpop.f32.mrf.mxu0
    %v442 = vadd.f32 0.0, %v441
    %v443 = vpop.f32.mrf.mxu0
    %444 = vmatprep.mubr.f32.mxu0 0.0
    %445 = vmatmul.mubr.f32.gmra.mxu0 %v269
    %v446 = vpop.f32.mrf.mxu0
    %v447 = vpop.f32.mrf.mxu0
    %448 = vmatprep.mubr.f32.mxu0 0.0
    %449 = vmatmul.mubr.f32.gmra.mxu0 %v272
    %v450 = vpop.f32.mrf.mxu0
    %v451 = vpop.f32.mrf.mxu0
    %452 = vmatprep.mubr.f32.mxu0 0.0
    %453 = vmatmul.mubr.f32.gmra.mxu0 %v275
    %v454 = vpop.f32.mrf.mxu0
    %v455 = vpop.f32.mrf.mxu0
    %456 = vmatprep.mubr.f32.mxu0 0.0
    %457 = vmatmul.mubr.f32.gmra.mxu0 %v278
    %v458 = vpop.f32.mrf.mxu0
    %v459 = vpop.f32.mrf.mxu0
    %460 = vmatprep.mubr.f32.mxu0 0.0
    %461 = vmatmul.mubr.f32.gmra.mxu0 %v281
    %v462 = vpop.f32.mrf.mxu0
    %v463 = vpop.f32.mrf.mxu0
    %464 = vmatprep.mubr.f32.mxu0 0.0
    %465 = vmatmul.mubr.f32.gmra.mxu0 %v284
    %v466 = vpop.f32.mrf.mxu0
    %v467 = vpop.f32.mrf.mxu0
    %468 = vmatprep.mubr.f32.mxu0 0.0
    %469 = vmatmul.mubr.f32.gmra.mxu0 %v287
    %v470 = vpop.f32.mrf.mxu0
    %v471 = vpop.f32.mrf.mxu0
    %472 = vmatprep.mubr.f32.mxu0 0.0
    %473 = vmatmul.mubr.f32.gmra.mxu0 %v290
    %v474 = vpop.f32.mrf.mxu0
    %v475 = vpop.f32.mrf.mxu0
    %476 = vmatprep.mubr.f32.mxu0 0.0
    %477 = vmatmul.mubr.f32.gmra.mxu0 %v293
    %v478 = vpop.f32.mrf.mxu0
    %v479 = vadd.f32 0.0, %v478
    %v480 = vpop.f32.mrf.mxu0
    %481 = vmatprep.mubr.f32.mxu0 0.0
    %482 = vmatmul.mubr.f32.gmra.mxu0 %v296
    %v483 = vpop.f32.mrf.mxu0
    %v484 = vadd.f32 0.0, %v483
    %v485 = vpop.f32.mrf.mxu0
    %486 = vmatprep.mubr.f32.mxu0 0.0
    %487 = vmatmul.mubr.f32.gmra.mxu0 %v299
    %v488 = vpop.f32.mrf.mxu0
    %v489 = vadd.f32 0.0, %v488
    %v490 = vpop.f32.mrf.mxu0
    %491 = vmatprep.mubr.f32.mxu0 0.0
    %492 = vmatmul.mubr.f32.gmra.mxu0 %v302
    %v493 = vpop.f32.mrf.mxu0
    %v494 = vadd.f32 0.0, %v493
    %v495 = vpop.f32.mrf.mxu0
    %496 = vmatprep.mubr.f32.mxu0 0.0
    %497 = vmatmul.mubr.f32.gmra.mxu0 %v305
    %v498 = vpop.f32.mrf.mxu0
    %v499 = vadd.f32 0.0, %v498
    %v500 = vpop.f32.mrf.mxu0
    %501 = vmatprep.mubr.f32.mxu0 0.0
    %502 = vmatmul.mubr.f32.gmra.mxu0 %v308
    %v503 = vpop.f32.mrf.mxu0
    %v504 = vadd.f32 0.0, %v503
    %v505 = vpop.f32.mrf.mxu0
    %506 = vmatprep.mubr.f32.mxu0 0.0
    %507 = vmatmul.mubr.f32.gmra.mxu0 %v311
    %v508 = vpop.f32.mrf.mxu0
    %v509 = vadd.f32 0.0, %v508
    %v510 = vpop.f32.mrf.mxu0
    %511 = vmatprep.mubr.f32.mxu0 0.0
    %512 = vmatmul.mubr.f32.gmra.mxu0 %v314
    %v513 = vpop.f32.mrf.mxu0
    %v514 = vadd.f32 0.0, %v513
    %v515 = vpop.f32.mrf.mxu0
    %516 = vmatprep.mubr.f32.mxu0 0.0
    %517 = vmatmul.mubr.f32.gmra.mxu0 %v317
    %v518 = vpop.f32.mrf.mxu0
    %v519 = vpop.f32.mrf.mxu0
    %520 = vmatprep.mubr.f32.mxu0 0.0
    %521 = vmatmul.mubr.f32.gmra.mxu0 %v320
    %v522 = vpop.f32.mrf.mxu0
    %v523 = vpop.f32.mrf.mxu0
    %524 = vmatprep.mubr.f32.mxu0 0.0
    %525 = vmatmul.mubr.f32.gmra.mxu0 %v323
    %v526 = vpop.f32.mrf.mxu0
    %v527 = vpop.f32.mrf.mxu0
    %528 = vmatprep.mubr.f32.mxu0 0.0
    %529 = vmatmul.mubr.f32.gmra.mxu0 %v326
    %v530 = vpop.f32.mrf.mxu0
    %v531 = vpop.f32.mrf.mxu0
    %532 = vmatprep.mubr.f32.mxu0 0.0
    %533 = vmatmul.mubr.f32.gmra.mxu0 %v329
    %v534 = vpop.f32.mrf.mxu0
    %v535 = vpop.f32.mrf.mxu0
    %536 = vmatprep.mubr.f32.mxu0 0.0
    %537 = vmatmul.mubr.f32.gmra.mxu0 %v332
    %v538 = vpop.f32.mrf.mxu0
    %v539 = vpop.f32.mrf.mxu0
    %540 = vmatprep.mubr.f32.mxu0 0.0
    %541 = vmatmul.mubr.f32.gmra.mxu0 %v335
    %v542 = vpop.f32.mrf.mxu0
    %v543 = vpop.f32.mrf.mxu0
    %544 = vmatprep.mubr.f32.mxu0 0.0
    %545 = vmatmul.mubr.f32.gmra.mxu0 %v338
    %v546 = vpop.f32.mrf.mxu0
    %v547 = vpop.f32.mrf.mxu0
    %548 = vdwg.mxu0
    %550 = vset.pattern.permute.xlu0 0
    %551 = vperm.xlu0 %550, %v407
    %v552 = vpop.permute.xlu0 %551
    %555 = vset.pattern.permute.xlu0 0
    %556 = vperm.xlu0 %555, %v412
    %v557 = vpop.permute.xlu0 %556
    %560 = vset.pattern.permute.xlu0 0
    %561 = vperm.xlu0 %560, %v417
    %v562 = vpop.permute.xlu0 %561
    %565 = vset.pattern.permute.xlu0 0
    %566 = vperm.xlu0 %565, %v422
    %v567 = vpop.permute.xlu0 %566
    %570 = vset.pattern.permute.xlu0 0
    %571 = vperm.xlu0 %570, %v427
    %v572 = vpop.permute.xlu0 %571
    %575 = vset.pattern.permute.xlu0 0
    %576 = vperm.xlu0 %575, %v432
    %v577 = vpop.permute.xlu0 %576
    %580 = vset.pattern.permute.xlu0 0
    %581 = vperm.xlu0 %580, %v437
    %v582 = vpop.permute.xlu0 %581
    %585 = vset.pattern.permute.xlu0 0
    %586 = vperm.xlu0 %585, %v442
    %v587 = vpop.permute.xlu0 %586
    %590 = vset.pattern.permute.xlu0 0
    %591 = vperm.xlu0 %590, %v479
    %v592 = vpop.permute.xlu0 %591
    %595 = vset.pattern.permute.xlu0 0
    %596 = vperm.xlu0 %595, %v484
    %v597 = vpop.permute.xlu0 %596
    %600 = vset.pattern.permute.xlu0 0
    %601 = vperm.xlu0 %600, %v489
    %v602 = vpop.permute.xlu0 %601
    %605 = vset.pattern.permute.xlu0 0
    %606 = vperm.xlu0 %605, %v494
    %v607 = vpop.permute.xlu0 %606
    %610 = vset.pattern.permute.xlu0 0
    %611 = vperm.xlu0 %610, %v499
    %v612 = vpop.permute.xlu0 %611
    %615 = vset.pattern.permute.xlu0 0
    %616 = vperm.xlu0 %615, %v504
    %v617 = vpop.permute.xlu0 %616
    %620 = vset.pattern.permute.xlu0 0
    %621 = vperm.xlu0 %620, %v509
    %v622 = vpop.permute.xlu0 %621
    %625 = vset.pattern.permute.xlu0 0
    %626 = vperm.xlu0 %625, %v514
    %v627 = vpop.permute.xlu0 %626
    %v629 = vmul.f32 %v552, %v121
    %v630 = vmul.f32 %v557, %v121
    %v631 = vmul.f32 %v562, %v121
    %v632 = vmul.f32 %v567, %v121
    %v633 = vmul.f32 %v572, %v121
    %v634 = vmul.f32 %v577, %v121
    %v635 = vmul.f32 %v582, %v121
    %v636 = vmul.f32 %v587, %v121
    %v637 = vmul.f32 %v592, %v149
    %v638 = vmul.f32 %v597, %v149
    %v639 = vmul.f32 %v602, %v149
    %v640 = vmul.f32 %v607, %v149
    %v641 = vmul.f32 %v612, %v149
    %v642 = vmul.f32 %v617, %v149
    %v643 = vmul.f32 %v622, %v149
    %v644 = vmul.f32 %v627, %v149
    %645 = vset.pattern.permute.xlu0 1
    %646 = vperm.xlu0 %645, %v407
    %v647 = vpop.permute.xlu0 %646
    %649 = vset.pattern.permute.xlu0 1
    %650 = vperm.xlu0 %649, %v412
    %v651 = vpop.permute.xlu0 %650
    %653 = vset.pattern.permute.xlu0 1
    %654 = vperm.xlu0 %653, %v417
    %v655 = vpop.permute.xlu0 %654
    %657 = vset.pattern.permute.xlu0 1
    %658 = vperm.xlu0 %657, %v422
    %v659 = vpop.permute.xlu0 %658
    %661 = vset.pattern.permute.xlu0 1
    %662 = vperm.xlu0 %661, %v427
    %v663 = vpop.permute.xlu0 %662
    %665 = vset.pattern.permute.xlu0 1
    %666 = vperm.xlu0 %665, %v432
    %v667 = vpop.permute.xlu0 %666
    %669 = vset.pattern.permute.xlu0 1
    %670 = vperm.xlu0 %669, %v437
    %v671 = vpop.permute.xlu0 %670
    %673 = vset.pattern.permute.xlu0 1
    %674 = vperm.xlu0 %673, %v442
    %v675 = vpop.permute.xlu0 %674
    %677 = vset.pattern.permute.xlu0 1
    %678 = vperm.xlu0 %677, %v479
    %v679 = vpop.permute.xlu0 %678
    %681 = vset.pattern.permute.xlu0 1
    %682 = vperm.xlu0 %681, %v484
    %v683 = vpop.permute.xlu0 %682
    %685 = vset.pattern.permute.xlu0 1
    %686 = vperm.xlu0 %685, %v489
    %v687 = vpop.permute.xlu0 %686
    %689 = vset.pattern.permute.xlu0 1
    %690 = vperm.xlu0 %689, %v494
    %v691 = vpop.permute.xlu0 %690
    %693 = vset.pattern.permute.xlu0 1
    %694 = vperm.xlu0 %693, %v499
    %v695 = vpop.permute.xlu0 %694
    %697 = vset.pattern.permute.xlu0 1
    %698 = vperm.xlu0 %697, %v504
    %v699 = vpop.permute.xlu0 %698
    %701 = vset.pattern.permute.xlu0 1
    %702 = vperm.xlu0 %701, %v509
    %v703 = vpop.permute.xlu0 %702
    %705 = vset.pattern.permute.xlu0 1
    %706 = vperm.xlu0 %705, %v514
    %v707 = vpop.permute.xlu0 %706
    %v709 = vmul.f32 %v647, %v128
    %v710 = vmul.f32 %v651, %v128
    %v711 = vmul.f32 %v655, %v128
    %v712 = vmul.f32 %v659, %v128
    %v713 = vmul.f32 %v663, %v128
    %v714 = vmul.f32 %v667, %v128
    %v715 = vmul.f32 %v671, %v128
    %v716 = vmul.f32 %v675, %v128
    %v717 = vmul.f32 %v679, %v156
    %v718 = vmul.f32 %v683, %v156
    %v719 = vmul.f32 %v687, %v156
    %v720 = vmul.f32 %v691, %v156
    %v721 = vmul.f32 %v695, %v156
    %v722 = vmul.f32 %v699, %v156
    %v723 = vmul.f32 %v703, %v156
    %v724 = vmul.f32 %v707, %v156
    %v725 = vadd.f32 %v629, %v709
    %v726 = vadd.f32 %v630, %v710
    %v727 = vadd.f32 %v631, %v711
    %v728 = vadd.f32 %v632, %v712
    %v729 = vadd.f32 %v633, %v713
    %v730 = vadd.f32 %v634, %v714
    %v731 = vadd.f32 %v635, %v715
    %v732 = vadd.f32 %v636, %v716
    %v733 = vadd.f32 %v637, %v717
    %v734 = vadd.f32 %v638, %v718
    %v735 = vadd.f32 %v639, %v719
    %v736 = vadd.f32 %v640, %v720
    %v737 = vadd.f32 %v641, %v721
    %v738 = vadd.f32 %v642, %v722
    %v739 = vadd.f32 %v643, %v723
    %v740 = vadd.f32 %v644, %v724
    %741 = vset.pattern.permute.xlu0 2
    %742 = vperm.xlu0 %741, %v407
    %v743 = vpop.permute.xlu0 %742
    %745 = vset.pattern.permute.xlu0 2
    %746 = vperm.xlu0 %745, %v412
    %v747 = vpop.permute.xlu0 %746
    %749 = vset.pattern.permute.xlu0 2
    %750 = vperm.xlu0 %749, %v417
    %v751 = vpop.permute.xlu0 %750
    %753 = vset.pattern.permute.xlu0 2
    %754 = vperm.xlu0 %753, %v422
    %v755 = vpop.permute.xlu0 %754
    %757 = vset.pattern.permute.xlu0 2
    %758 = vperm.xlu0 %757, %v427
    %v759 = vpop.permute.xlu0 %758
    %761 = vset.pattern.permute.xlu0 2
    %762 = vperm.xlu0 %761, %v432
    %v763 = vpop.permute.xlu0 %762
    %765 = vset.pattern.permute.xlu0 2
    %766 = vperm.xlu0 %765, %v437
    %v767 = vpop.permute.xlu0 %766
    %769 = vset.pattern.permute.xlu0 2
    %770 = vperm.xlu0 %769, %v442
    %v771 = vpop.permute.xlu0 %770
    %773 = vset.pattern.permute.xlu0 2
    %774 = vperm.xlu0 %773, %v479
    %v775 = vpop.permute.xlu0 %774
    %777 = vset.pattern.permute.xlu0 2
    %778 = vperm.xlu0 %777, %v484
    %v779 = vpop.permute.xlu0 %778
    %781 = vset.pattern.permute.xlu0 2
    %782 = vperm.xlu0 %781, %v489
    %v783 = vpop.permute.xlu0 %782
    %785 = vset.pattern.permute.xlu0 2
    %786 = vperm.xlu0 %785, %v494
    %v787 = vpop.permute.xlu0 %786
    %789 = vset.pattern.permute.xlu0 2
    %790 = vperm.xlu0 %789, %v499
    %v791 = vpop.permute.xlu0 %790
    %793 = vset.pattern.permute.xlu0 2
    %794 = vperm.xlu0 %793, %v504
    %v795 = vpop.permute.xlu0 %794
    %797 = vset.pattern.permute.xlu0 2
    %798 = vperm.xlu0 %797, %v509
    %v799 = vpop.permute.xlu0 %798
    %801 = vset.pattern.permute.xlu0 2
    %802 = vperm.xlu0 %801, %v514
    %v803 = vpop.permute.xlu0 %802
    %v805 = vmul.f32 %v743, %v135
    %v806 = vmul.f32 %v747, %v135
    %v807 = vmul.f32 %v751, %v135
    %v808 = vmul.f32 %v755, %v135
    %v809 = vmul.f32 %v759, %v135
    %v810 = vmul.f32 %v763, %v135
    %v811 = vmul.f32 %v767, %v135
    %v812 = vmul.f32 %v771, %v135
    %v813 = vmul.f32 %v775, %v163
    %v814 = vmul.f32 %v779, %v163
    %v815 = vmul.f32 %v783, %v163
    %v816 = vmul.f32 %v787, %v163
    %v817 = vmul.f32 %v791, %v163
    %v818 = vmul.f32 %v795, %v163
    %v819 = vmul.f32 %v799, %v163
    %v820 = vmul.f32 %v803, %v163
    %v821 = vadd.f32 %v725, %v805
    %v822 = vadd.f32 %v726, %v806
    %v823 = vadd.f32 %v727, %v807
    %v824 = vadd.f32 %v728, %v808
    %v825 = vadd.f32 %v729, %v809
    %v826 = vadd.f32 %v730, %v810
    %v827 = vadd.f32 %v731, %v811
    %v828 = vadd.f32 %v732, %v812
    %v829 = vadd.f32 %v733, %v813
    %v830 = vadd.f32 %v734, %v814
    %v831 = vadd.f32 %v735, %v815
    %v832 = vadd.f32 %v736, %v816
    %v833 = vadd.f32 %v737, %v817
    %v834 = vadd.f32 %v738, %v818
    %v835 = vadd.f32 %v739, %v819
    %v836 = vadd.f32 %v740, %v820
    %837 = vset.pattern.permute.xlu0 3
    %838 = vperm.xlu0 %837, %v407
    %v839 = vpop.permute.xlu0 %838
    %841 = vset.pattern.permute.xlu0 3
    %842 = vperm.xlu0 %841, %v412
    %v843 = vpop.permute.xlu0 %842
    %845 = vset.pattern.permute.xlu0 3
    %846 = vperm.xlu0 %845, %v417
    %v847 = vpop.permute.xlu0 %846
    %849 = vset.pattern.permute.xlu0 3
    %850 = vperm.xlu0 %849, %v422
    %v851 = vpop.permute.xlu0 %850
    %853 = vset.pattern.permute.xlu0 3
    %854 = vperm.xlu0 %853, %v427
    %v855 = vpop.permute.xlu0 %854
    %857 = vset.pattern.permute.xlu0 3
    %858 = vperm.xlu0 %857, %v432
    %v859 = vpop.permute.xlu0 %858
    %861 = vset.pattern.permute.xlu0 3
    %862 = vperm.xlu0 %861, %v437
    %v863 = vpop.permute.xlu0 %862
    %865 = vset.pattern.permute.xlu0 3
    %866 = vperm.xlu0 %865, %v442
    %v867 = vpop.permute.xlu0 %866
    %869 = vset.pattern.permute.xlu0 3
    %870 = vperm.xlu0 %869, %v479
    %v871 = vpop.permute.xlu0 %870
    %873 = vset.pattern.permute.xlu0 3
    %874 = vperm.xlu0 %873, %v484
    %v875 = vpop.permute.xlu0 %874
    %877 = vset.pattern.permute.xlu0 3
    %878 = vperm.xlu0 %877, %v489
    %v879 = vpop.permute.xlu0 %878
    %881 = vset.pattern.permute.xlu0 3
    %882 = vperm.xlu0 %881, %v494
    %v883 = vpop.permute.xlu0 %882
    %885 = vset.pattern.permute.xlu0 3
    %886 = vperm.xlu0 %885, %v499
    %v887 = vpop.permute.xlu0 %886
    %889 = vset.pattern.permute.xlu0 3
    %890 = vperm.xlu0 %889, %v504
    %v891 = vpop.permute.xlu0 %890
    %893 = vset.pattern.permute.xlu0 3
    %894 = vperm.xlu0 %893, %v509
    %v895 = vpop.permute.xlu0 %894
    %897 = vset.pattern.permute.xlu0 3
    %898 = vperm.xlu0 %897, %v514
    %v899 = vpop.permute.xlu0 %898
    %v901 = vmul.f32 %v839, %v142
    %v902 = vmul.f32 %v843, %v142
    %v903 = vmul.f32 %v847, %v142
    %v904 = vmul.f32 %v851, %v142
    %v905 = vmul.f32 %v855, %v142
    %v906 = vmul.f32 %v859, %v142
    %v907 = vmul.f32 %v863, %v142
    %v908 = vmul.f32 %v867, %v142
    %v909 = vmul.f32 %v871, %v170
    %v910 = vmul.f32 %v875, %v170
    %v911 = vmul.f32 %v879, %v170
    %v912 = vmul.f32 %v883, %v170
    %v913 = vmul.f32 %v887, %v170
    %v914 = vmul.f32 %v891, %v170
    %v915 = vmul.f32 %v895, %v170
    %v916 = vmul.f32 %v899, %v170
    %v917 = vadd.f32 %v821, %v901
    %v918 = vadd.f32 %v822, %v902
    %v919 = vadd.f32 %v823, %v903
    %v920 = vadd.f32 %v824, %v904
    %v921 = vadd.f32 %v825, %v905
    %v922 = vadd.f32 %v826, %v906
    %v923 = vadd.f32 %v827, %v907
    %v924 = vadd.f32 %v828, %v908
    %v925 = vadd.f32 %v829, %v909
    %v926 = vadd.f32 %v830, %v910
    %v927 = vadd.f32 %v831, %v911
    %v928 = vadd.f32 %v832, %v912
    %v929 = vadd.f32 %v833, %v913
    %v930 = vadd.f32 %v834, %v914
    %v931 = vadd.f32 %v835, %v915
    %v932 = vadd.f32 %v836, %v916
    %v933 = vld [vmem:[%s3] sm:$0xff]
    %v934 = vld [vmem:[%s3 + $0x8] sm:$0xff]
    %v935 = vld [vmem:[%s3 + $0x10] sm:$0xff]
    %v936 = vld [vmem:[%s3 + $0x18] sm:$0xff]
    %v937 = vld [vmem:[%s3 + $0x20] sm:$0xff]
    %v938 = vld [vmem:[%s3 + $0x28] sm:$0xff]
    %v939 = vld [vmem:[%s3 + $0x30] sm:$0xff]
    %v940 = vld [vmem:[%s3 + $0x38] sm:$0xff]
    %v941 = vadd.f32 %v917, %v933
    %v942 = vadd.f32 %v918, %v934
    %v943 = vadd.f32 %v919, %v935
    %v944 = vadd.f32 %v920, %v936
    %v945 = vadd.f32 %v921, %v937
    %v946 = vadd.f32 %v922, %v938
    %v947 = vadd.f32 %v923, %v939
    %v948 = vadd.f32 %v924, %v940
    %v949 = vadd.f32 %v925, %v933
    %v950 = vadd.f32 %v926, %v934
    %v951 = vadd.f32 %v927, %v935
    %v952 = vadd.f32 %v928, %v936
    %v953 = vadd.f32 %v929, %v937
    %v954 = vadd.f32 %v930, %v938
    %v955 = vadd.f32 %v931, %v939
    %v956 = vadd.f32 %v932, %v940
    %v957 = vxor.u32 %v941, 2147483648
    %v958 = vxor.u32 %v942, 2147483648
    %v959 = vxor.u32 %v943, 2147483648
    %v960 = vxor.u32 %v944, 2147483648
    %v961 = vxor.u32 %v945, 2147483648
    %v962 = vxor.u32 %v946, 2147483648
    %v963 = vxor.u32 %v947, 2147483648
    %v964 = vxor.u32 %v948, 2147483648
    %v965 = vxor.u32 %v949, 2147483648
    %v966 = vxor.u32 %v950, 2147483648
    %v967 = vxor.u32 %v951, 2147483648
    %v968 = vxor.u32 %v952, 2147483648
    %v969 = vxor.u32 %v953, 2147483648
    %v970 = vxor.u32 %v954, 2147483648
    %v971 = vxor.u32 %v955, 2147483648
    %v972 = vxor.u32 %v956, 2147483648
    %v973 = vmul.f32 %v957, 1.442695
    %v974 = vpow.pop %v973
    %v975 = vmul.f32 %v958, 1.442695
    %v976 = vpow.pop %v975
    %v977 = vmul.f32 %v959, 1.442695
    %v978 = vpow.pop %v977
    %v979 = vmul.f32 %v960, 1.442695
    %v980 = vpow.pop %v979
    %v981 = vmul.f32 %v961, 1.442695
    %v982 = vpow.pop %v981
    %v983 = vmul.f32 %v962, 1.442695
    %v984 = vpow.pop %v983
    %v985 = vmul.f32 %v963, 1.442695
    %v986 = vpow.pop %v985
    %v987 = vmul.f32 %v964, 1.442695
    %v988 = vpow.pop %v987
    %v989 = vmul.f32 %v965, 1.442695
    %v990 = vpow.pop %v989
    %v991 = vmul.f32 %v966, 1.442695
    %v992 = vpow.pop %v991
    %v993 = vmul.f32 %v967, 1.442695
    %v994 = vpow.pop %v993
    %v995 = vmul.f32 %v968, 1.442695
    %v996 = vpow.pop %v995
    %v997 = vmul.f32 %v969, 1.442695
    %v998 = vpow.pop %v997
    %v999 = vmul.f32 %v970, 1.442695
    %v1000 = vpow.pop %v999
    %v1001 = vmul.f32 %v971, 1.442695
    %v1002 = vpow.pop %v1001
    %v1003 = vmul.f32 %v972, 1.442695
    %v1004 = vpow.pop %v1003
    %v1005 = vadd.f32 %v974, 1.0
    %v1006 = vadd.f32 %v976, 1.0
    %v1007 = vadd.f32 %v978, 1.0
    %v1008 = vadd.f32 %v980, 1.0
    %v1009 = vadd.f32 %v982, 1.0
    %v1010 = vadd.f32 %v984, 1.0
    %v1011 = vadd.f32 %v986, 1.0
    %v1012 = vadd.f32 %v988, 1.0
    %v1013 = vadd.f32 %v990, 1.0
    %v1014 = vadd.f32 %v992, 1.0
    %v1015 = vadd.f32 %v994, 1.0
    %v1016 = vadd.f32 %v996, 1.0
    %v1017 = vadd.f32 %v998, 1.0
    %v1018 = vadd.f32 %v1000, 1.0
    %v1019 = vadd.f32 %v1002, 1.0
    %v1020 = vadd.f32 %v1004, 1.0
    %v1021 = vrcp.pop %v1005
    %v1022 = vmul.f32 1.0, %v1021
    %v1023 = vrcp.pop %v1006
    %v1024 = vmul.f32 1.0, %v1023
    %v1025 = vrcp.pop %v1007
    %v1026 = vmul.f32 1.0, %v1025
    %v1027 = vrcp.pop %v1008
    %v1028 = vmul.f32 1.0, %v1027
    %v1029 = vrcp.pop %v1009
    %v1030 = vmul.f32 1.0, %v1029
    %v1031 = vrcp.pop %v1010
    %v1032 = vmul.f32 1.0, %v1031
    %v1033 = vrcp.pop %v1011
    %v1034 = vmul.f32 1.0, %v1033
    %v1035 = vrcp.pop %v1012
    %v1036 = vmul.f32 1.0, %v1035
    %v1037 = vrcp.pop %v1013
    %v1038 = vmul.f32 1.0, %v1037
    %v1039 = vrcp.pop %v1014
    %v1040 = vmul.f32 1.0, %v1039
    %v1041 = vrcp.pop %v1015
    %v1042 = vmul.f32 1.0, %v1041
    %v1043 = vrcp.pop %v1016
    %v1044 = vmul.f32 1.0, %v1043
    %v1045 = vrcp.pop %v1017
    %v1046 = vmul.f32 1.0, %v1045
    %v1047 = vrcp.pop %v1018
    %v1048 = vmul.f32 1.0, %v1047
    %v1049 = vrcp.pop %v1019
    %v1050 = vmul.f32 1.0, %v1049
    %v1051 = vrcp.pop %v1020
    %v1052 = vmul.f32 1.0, %v1051
    %v1053 = vld [vmem:[#allocation5] sm:$0xff]
    %v1054 = vld [vmem:[#allocation5 + $0x8] sm:$0xff]
    %v1055 = vld [vmem:[#allocation5 + $0x10] sm:$0xff]
    %v1056 = vld [vmem:[#allocation5 + $0x18] sm:$0xff]
    %v1057 = vld [vmem:[#allocation5 + $0x20] sm:$0xff]
    %v1058 = vld [vmem:[#allocation5 + $0x28] sm:$0xff]
    %v1059 = vld [vmem:[#allocation5 + $0x30] sm:$0xff]
    %v1060 = vld [vmem:[#allocation5 + $0x38] sm:$0xff]
    %v1062 = vsel %vm243, %v1053, 0
    %v1065 = vsel %vm243, %v1054, 0
    %v1068 = vsel %vm243, %v1055, 0
    %v1071 = vsel %vm243, %v1056, 0
    %v1074 = vsel %vm243, %v1057, 0
    %v1077 = vsel %vm243, %v1058, 0
    %v1080 = vsel %vm243, %v1059, 0
    %v1083 = vsel %vm243, %v1060, 0
    %1085 = vmatprep.subr.mxu0 0.0
    %1086 = vmatpush1.msra.mxu0 0.0
    %1087 = vmatprep.subr.mxu0 0.0
    %1088 = vmatpush1.msra.mxu0 0.0
    %1089 = vmatprep.subr.mxu0 0.0
    %1090 = vmatpush1.msra.mxu0 0.0
    %1091 = vmatprep.subr.mxu0 0.0
    %1092 = vmatpush1.msra.mxu0 0.0
    %1093 = vmatprep.subr.mxu0 0.0
    %1094 = vmatpush1.msra.mxu0 0.0
    %1095 = vmatprep.subr.mxu0 0.0
    %1096 = vmatpush1.msra.mxu0 0.0
    %1097 = vmatprep.subr.mxu0 0.0
    %1098 = vmatpush1.msra.mxu0 0.0
    %1099 = vmatprep.subr.mxu0 0.0
    %1100 = vmatpush1.msra.mxu0 0.0
    %1101 = vmatprep.subr.mxu0 0.0
    %1102 = vmatpush1.msra.mxu0 %v1036
    %1103 = vmatprep.subr.mxu0 0.0
    %1104 = vmatpush1.msra.mxu0 %v1034
    %1105 = vmatprep.subr.mxu0 0.0
    %1106 = vmatpush1.msra.mxu0 %v1032
    %1107 = vmatprep.subr.mxu0 0.0
    %1108 = vmatpush1.msra.mxu0 %v1030
    %1109 = vmatprep.subr.mxu0 0.0
    %1110 = vmatpush1.msra.mxu0 %v1028
    %1111 = vmatprep.subr.mxu0 0.0
    %1112 = vmatpush1.msra.mxu0 %v1026
    %1113 = vmatprep.subr.mxu0 0.0
    %1114 = vmatpush1.msra.mxu0 %v1024
    %1115 = vmatprep.subr.mxu0 0.0
    %1116 = vmatpush1.msra.mxu0 %v1022
    %1117 = vmatprep.subr.mxu0 0.0
    %1118 = vmatpush2.msra.mxu0 0.0
    %1119 = vmatprep.subr.mxu0 0.0
    %1120 = vmatpush2.msra.mxu0 0.0
    %1121 = vmatprep.subr.mxu0 0.0
    %1122 = vmatpush2.msra.mxu0 0.0
    %1123 = vmatprep.subr.mxu0 0.0
    %1124 = vmatpush2.msra.mxu0 0.0
    %1125 = vmatprep.subr.mxu0 0.0
    %1126 = vmatpush2.msra.mxu0 0.0
    %1127 = vmatprep.subr.mxu0 0.0
    %1128 = vmatpush2.msra.mxu0 0.0
    %1129 = vmatprep.subr.mxu0 0.0
    %1130 = vmatpush2.msra.mxu0 0.0
    %1131 = vmatprep.subr.mxu0 0.0
    %1132 = vmatpush2.msra.mxu0 0.0
    %1133 = vmatprep.subr.mxu0 0.0
    %1134 = vmatpush2.msra.mxu0 0.0
    %1135 = vmatprep.subr.mxu0 0.0
    %1136 = vmatpush2.msra.mxu0 0.0
    %1137 = vmatprep.subr.mxu0 0.0
    %1138 = vmatpush2.msra.mxu0 0.0
    %1139 = vmatprep.subr.mxu0 0.0
    %1140 = vmatpush2.msra.mxu0 0.0
    %1141 = vmatprep.subr.mxu0 0.0
    %1142 = vmatpush2.msra.mxu0 0.0
    %1143 = vmatprep.subr.mxu0 0.0
    %1144 = vmatpush2.msra.mxu0 0.0
    %1145 = vmatprep.subr.mxu0 0.0
    %1146 = vmatpush2.msra.mxu0 0.0
    %1147 = vmatprep.subr.mxu0 0.0
    %1148 = vmatpush2.msra.mxu0 0.0
    %1149 = vmatprep.mubr.f32.mxu0 0.0
    %1150 = vmatmul.mubr.f32.gmra.mxu0 %v1062
    %v1151 = vpop.f32.mrf.mxu0
    %v1152 = vadd.f32 0.0, %v1151
    %v1153 = vpop.f32.mrf.mxu0
    %1154 = vmatprep.mubr.f32.mxu0 0.0
    %1155 = vmatmul.mubr.f32.gmra.mxu0 %v1065
    %v1156 = vpop.f32.mrf.mxu0
    %v1157 = vadd.f32 0.0, %v1156
    %v1158 = vpop.f32.mrf.mxu0
    %1159 = vmatprep.mubr.f32.mxu0 0.0
    %1160 = vmatmul.mubr.f32.gmra.mxu0 %v1068
    %v1161 = vpop.f32.mrf.mxu0
    %v1162 = vadd.f32 0.0, %v1161
    %v1163 = vpop.f32.mrf.mxu0
    %1164 = vmatprep.mubr.f32.mxu0 0.0
    %1165 = vmatmul.mubr.f32.gmra.mxu0 %v1071
    %v1166 = vpop.f32.mrf.mxu0
    %v1167 = vadd.f32 0.0, %v1166
    %v1168 = vpop.f32.mrf.mxu0
    %1169 = vmatprep.mubr.f32.mxu0 0.0
    %1170 = vmatmul.mubr.f32.gmra.mxu0 %v1074
    %v1171 = vpop.f32.mrf.mxu0
    %v1172 = vadd.f32 0.0, %v1171
    %v1173 = vpop.f32.mrf.mxu0
    %1174 = vmatprep.mubr.f32.mxu0 0.0
    %1175 = vmatmul.mubr.f32.gmra.mxu0 %v1077
    %v1176 = vpop.f32.mrf.mxu0
    %v1177 = vadd.f32 0.0, %v1176
    %v1178 = vpop.f32.mrf.mxu0
    %1179 = vmatprep.mubr.f32.mxu0 0.0
    %1180 = vmatmul.mubr.f32.gmra.mxu0 %v1080
    %v1181 = vpop.f32.mrf.mxu0
    %v1182 = vadd.f32 0.0, %v1181
    %v1183 = vpop.f32.mrf.mxu0
    %1184 = vmatprep.mubr.f32.mxu0 0.0
    %1185 = vmatmul.mubr.f32.gmra.mxu0 %v1083
    %v1186 = vpop.f32.mrf.mxu0
    %v1187 = vadd.f32 0.0, %v1186
    %v1188 = vpop.f32.mrf.mxu0
    %1189 = vdwg.mxu0
    %1190 = vmatprep.subr.mxu0 0.0
    %1191 = vmatpush1.msra.mxu0 0.0
    %1192 = vmatprep.subr.mxu0 0.0
    %1193 = vmatpush1.msra.mxu0 0.0
    %1194 = vmatprep.subr.mxu0 0.0
    %1195 = vmatpush1.msra.mxu0 0.0
    %1196 = vmatprep.subr.mxu0 0.0
    %1197 = vmatpush1.msra.mxu0 0.0
    %1198 = vmatprep.subr.mxu0 0.0
    %1199 = vmatpush1.msra.mxu0 0.0
    %1200 = vmatprep.subr.mxu0 0.0
    %1201 = vmatpush1.msra.mxu0 0.0
    %1202 = vmatprep.subr.mxu0 0.0
    %1203 = vmatpush1.msra.mxu0 0.0
    %1204 = vmatprep.subr.mxu0 0.0
    %1205 = vmatpush1.msra.mxu0 0.0
    %1206 = vmatprep.subr.mxu0 0.0
    %1207 = vmatpush1.msra.mxu0 %v1052
    %1208 = vmatprep.subr.mxu0 0.0
    %1209 = vmatpush1.msra.mxu0 %v1050
    %1210 = vmatprep.subr.mxu0 0.0
    %1211 = vmatpush1.msra.mxu0 %v1048
    %1212 = vmatprep.subr.mxu0 0.0
    %1213 = vmatpush1.msra.mxu0 %v1046
    %1214 = vmatprep.subr.mxu0 0.0
    %1215 = vmatpush1.msra.mxu0 %v1044
    %1216 = vmatprep.subr.mxu0 0.0
    %1217 = vmatpush1.msra.mxu0 %v1042
    %1218 = vmatprep.subr.mxu0 0.0
    %1219 = vmatpush1.msra.mxu0 %v1040
    %1220 = vmatprep.subr.mxu0 0.0
    %1221 = vmatpush1.msra.mxu0 %v1038
    %1222 = vmatprep.subr.mxu0 0.0
    %1223 = vmatpush2.msra.mxu0 0.0
    %1224 = vmatprep.subr.mxu0 0.0
    %1225 = vmatpush2.msra.mxu0 0.0
    %1226 = vmatprep.subr.mxu0 0.0
    %1227 = vmatpush2.msra.mxu0 0.0
    %1228 = vmatprep.subr.mxu0 0.0
    %1229 = vmatpush2.msra.mxu0 0.0
    %1230 = vmatprep.subr.mxu0 0.0
    %1231 = vmatpush2.msra.mxu0 0.0
    %1232 = vmatprep.subr.mxu0 0.0
    %1233 = vmatpush2.msra.mxu0 0.0
    %1234 = vmatprep.subr.mxu0 0.0
    %1235 = vmatpush2.msra.mxu0 0.0
    %1236 = vmatprep.subr.mxu0 0.0
    %1237 = vmatpush2.msra.mxu0 0.0
    %1238 = vmatprep.subr.mxu0 0.0
    %1239 = vmatpush2.msra.mxu0 0.0
    %1240 = vmatprep.subr.mxu0 0.0
    %1241 = vmatpush2.msra.mxu0 0.0
    %1242 = vmatprep.subr.mxu0 0.0
    %1243 = vmatpush2.msra.mxu0 0.0
    %1244 = vmatprep.subr.mxu0 0.0
    %1245 = vmatpush2.msra.mxu0 0.0
    %1246 = vmatprep.subr.mxu0 0.0
    %1247 = vmatpush2.msra.mxu0 0.0
    %1248 = vmatprep.subr.mxu0 0.0
    %1249 = vmatpush2.msra.mxu0 0.0
    %1250 = vmatprep.subr.mxu0 0.0
    %1251 = vmatpush2.msra.mxu0 0.0
    %1252 = vmatprep.subr.mxu0 0.0
    %1253 = vmatpush2.msra.mxu0 0.0
    %1254 = vmatprep.mubr.f32.mxu0 0.0
    %1255 = vmatmul.mubr.f32.gmra.mxu0 %v1062
    %v1256 = vpop.f32.mrf.mxu0
    %v1257 = vadd.f32 0.0, %v1256
    %v1258 = vpop.f32.mrf.mxu0
    %1259 = vmatprep.mubr.f32.mxu0 0.0
    %1260 = vmatmul.mubr.f32.gmra.mxu0 %v1065
    %v1261 = vpop.f32.mrf.mxu0
    %v1262 = vadd.f32 0.0, %v1261
    %v1263 = vpop.f32.mrf.mxu0
    %1264 = vmatprep.mubr.f32.mxu0 0.0
    %1265 = vmatmul.mubr.f32.gmra.mxu0 %v1068
    %v1266 = vpop.f32.mrf.mxu0
    %v1267 = vadd.f32 0.0, %v1266
    %v1268 = vpop.f32.mrf.mxu0
    %1269 = vmatprep.mubr.f32.mxu0 0.0
    %1270 = vmatmul.mubr.f32.gmra.mxu0 %v1071
    %v1271 = vpop.f32.mrf.mxu0
    %v1272 = vadd.f32 0.0, %v1271
    %v1273 = vpop.f32.mrf.mxu0
    %1274 = vmatprep.mubr.f32.mxu0 0.0
    %1275 = vmatmul.mubr.f32.gmra.mxu0 %v1074
    %v1276 = vpop.f32.mrf.mxu0
    %v1277 = vadd.f32 0.0, %v1276
    %v1278 = vpop.f32.mrf.mxu0
    %1279 = vmatprep.mubr.f32.mxu0 0.0
    %1280 = vmatmul.mubr.f32.gmra.mxu0 %v1077
    %v1281 = vpop.f32.mrf.mxu0
    %v1282 = vadd.f32 0.0, %v1281
    %v1283 = vpop.f32.mrf.mxu0
    %1284 = vmatprep.mubr.f32.mxu0 0.0
    %1285 = vmatmul.mubr.f32.gmra.mxu0 %v1080
    %v1286 = vpop.f32.mrf.mxu0
    %v1287 = vadd.f32 0.0, %v1286
    %v1288 = vpop.f32.mrf.mxu0
    %1289 = vmatprep.mubr.f32.mxu0 0.0
    %1290 = vmatmul.mubr.f32.gmra.mxu0 %v1083
    %v1291 = vpop.f32.mrf.mxu0
    %v1292 = vadd.f32 0.0, %v1291
    %v1293 = vpop.f32.mrf.mxu0
    %1294 = vdwg.mxu0
    %v1295 = vadd.f32 %v1152, %v1157
    %v1296 = vadd.f32 %v1295, %v1162
    %v1297 = vadd.f32 %v1296, %v1167
    %v1298 = vadd.f32 %v1297, %v1172
    %v1299 = vadd.f32 %v1298, %v1177
    %v1300 = vadd.f32 %v1299, %v1182
    %v1301 = vadd.f32 %v1300, %v1187
    %v1302 = vadd.f32 %v1301, %v1257
    %v1303 = vadd.f32 %v1302, %v1262
    %v1304 = vadd.f32 %v1303, %v1267
    %v1305 = vadd.f32 %v1304, %v1272
    %v1306 = vadd.f32 %v1305, %v1277
    %v1307 = vadd.f32 %v1306, %v1282
    %v1308 = vadd.f32 %v1307, %v1287
    %v1309 = vadd.f32 %v1308, %v1292
    %v1310 = vrot.slane %v1309, 4
    %v1311 = vadd.f32 %v1309, %v1310
    %v1312 = vrot.slane %v1311, 2
    %v1313 = vadd.f32 %v1311, %v1312
    %v1314 = vrot.slane %v1313, 1
    %v1315 = vadd.f32 %v1313, %v1314
    %v1316 = vmul.f32 %v1315, 0.008333334
    %v1317 = vsub.f32 %v1152, %v1316
    %v1318 = vsub.f32 %v1157, %v1316
    %v1319 = vsub.f32 %v1162, %v1316
    %v1320 = vsub.f32 %v1167, %v1316
    %v1321 = vsub.f32 %v1172, %v1316
    %v1322 = vsub.f32 %v1177, %v1316
    %v1323 = vsub.f32 %v1182, %v1316
    %v1324 = vsub.f32 %v1187, %v1316
    %v1325 = vsub.f32 %v1257, %v1316
    %v1326 = vsub.f32 %v1262, %v1316
    %v1327 = vsub.f32 %v1267, %v1316
    %v1328 = vsub.f32 %v1272, %v1316
    %v1329 = vsub.f32 %v1277, %v1316
    %v1330 = vsub.f32 %v1282, %v1316
    %v1331 = vsub.f32 %v1287, %v1316
    %v1332 = vsub.f32 %v1292, %v1316
    %v1333 = vlaneseq
    %v1334 = vshrl.u32 %v1333, 7
    %v1335 = vadd.s32 %v1334, 8
    %v1336 = vadd.s32 %v1334, 16
    %v1337 = vadd.s32 %v1334, 24
    %v1338 = vadd.s32 %v1334, 32
    %v1339 = vadd.s32 %v1334, 40
    %v1340 = vadd.s32 %v1334, 48
    %v1341 = vadd.s32 %v1334, 56
    %v1342 = vadd.s32 %v1334, 64
    %v1343 = vadd.s32 %v1334, 72
    %v1344 = vadd.s32 %v1334, 80
    %v1345 = vadd.s32 %v1334, 88
    %v1346 = vadd.s32 %v1334, 96
    %v1347 = vadd.s32 %v1334, 104
    %v1348 = vadd.s32 %v1334, 112
    %v1349 = vadd.s32 %v1334, 120
    %vm1350 = vcmp.lt.s32.totalorder %v1334, 0
    %v1351 = vsub.s32 0, %v1334
    %v1352 = vsel %vm1350, %v1351, %v1334
    %v1353 = vshrl.u32 %v1352, 6
    %v1354 = vand.u32 %v1352, 63
    %v1355 = vsub.s32 0, %v1354
    %v1356 = vsel %vm1350, %v1355, %v1354
    %vm1357 = vcmp.lt.s32.totalorder %v1335, 0
    %v1358 = vsub.s32 0, %v1335
    %v1359 = vsel %vm1357, %v1358, %v1335
    %v1360 = vshrl.u32 %v1359, 6
    %v1361 = vand.u32 %v1359, 63
    %v1362 = vsub.s32 0, %v1361
    %v1363 = vsel %vm1357, %v1362, %v1361
    %vm1364 = vcmp.lt.s32.totalorder %v1336, 0
    %v1365 = vsub.s32 0, %v1336
    %v1366 = vsel %vm1364, %v1365, %v1336
    %v1367 = vshrl.u32 %v1366, 6
    %v1368 = vand.u32 %v1366, 63
    %v1369 = vsub.s32 0, %v1368
    %v1370 = vsel %vm1364, %v1369, %v1368
    %vm1371 = vcmp.lt.s32.totalorder %v1337, 0
    %v1372 = vsub.s32 0, %v1337
    %v1373 = vsel %vm1371, %v1372, %v1337
    %v1374 = vshrl.u32 %v1373, 6
    %v1375 = vand.u32 %v1373, 63
    %v1376 = vsub.s32 0, %v1375
    %v1377 = vsel %vm1371, %v1376, %v1375
    %vm1378 = vcmp.lt.s32.totalorder %v1338, 0
    %v1379 = vsub.s32 0, %v1338
    %v1380 = vsel %vm1378, %v1379, %v1338
    %v1381 = vshrl.u32 %v1380, 6
    %v1382 = vand.u32 %v1380, 63
    %v1383 = vsub.s32 0, %v1382
    %v1384 = vsel %vm1378, %v1383, %v1382
    %vm1385 = vcmp.lt.s32.totalorder %v1339, 0
    %v1386 = vsub.s32 0, %v1339
    %v1387 = vsel %vm1385, %v1386, %v1339
    %v1388 = vshrl.u32 %v1387, 6
    %v1389 = vand.u32 %v1387, 63
    %v1390 = vsub.s32 0, %v1389
    %v1391 = vsel %vm1385, %v1390, %v1389
    %vm1392 = vcmp.lt.s32.totalorder %v1340, 0
    %v1393 = vsub.s32 0, %v1340
    %v1394 = vsel %vm1392, %v1393, %v1340
    %v1395 = vshrl.u32 %v1394, 6
    %v1396 = vand.u32 %v1394, 63
    %v1397 = vsub.s32 0, %v1396
    %v1398 = vsel %vm1392, %v1397, %v1396
    %vm1399 = vcmp.lt.s32.totalorder %v1341, 0
    %v1400 = vsub.s32 0, %v1341
    %v1401 = vsel %vm1399, %v1400, %v1341
    %v1402 = vshrl.u32 %v1401, 6
    %v1403 = vand.u32 %v1401, 63
    %v1404 = vsub.s32 0, %v1403
    %v1405 = vsel %vm1399, %v1404, %v1403
    %vm1406 = vcmp.lt.s32.totalorder %v1342, 0
    %v1407 = vsub.s32 0, %v1342
    %v1408 = vsel %vm1406, %v1407, %v1342
    %v1409 = vshrl.u32 %v1408, 6
    %v1410 = vand.u32 %v1408, 63
    %v1411 = vsub.s32 0, %v1410
    %v1412 = vsel %vm1406, %v1411, %v1410
    %vm1413 = vcmp.lt.s32.totalorder %v1343, 0
    %v1414 = vsub.s32 0, %v1343
    %v1415 = vsel %vm1413, %v1414, %v1343
    %v1416 = vshrl.u32 %v1415, 6
    %v1417 = vand.u32 %v1415, 63
    %v1418 = vsub.s32 0, %v1417
    %v1419 = vsel %vm1413, %v1418, %v1417
    %vm1420 = vcmp.lt.s32.totalorder %v1344, 0
    %v1421 = vsub.s32 0, %v1344
    %v1422 = vsel %vm1420, %v1421, %v1344
    %v1423 = vshrl.u32 %v1422, 6
    %v1424 = vand.u32 %v1422, 63
    %v1425 = vsub.s32 0, %v1424
    %v1426 = vsel %vm1420, %v1425, %v1424
    %vm1427 = vcmp.lt.s32.totalorder %v1345, 0
    %v1428 = vsub.s32 0, %v1345
    %v1429 = vsel %vm1427, %v1428, %v1345
    %v1430 = vshrl.u32 %v1429, 6
    %v1431 = vand.u32 %v1429, 63
    %v1432 = vsub.s32 0, %v1431
    %v1433 = vsel %vm1427, %v1432, %v1431
    %vm1434 = vcmp.lt.s32.totalorder %v1346, 0
    %v1435 = vsub.s32 0, %v1346
    %v1436 = vsel %vm1434, %v1435, %v1346
    %v1437 = vshrl.u32 %v1436, 6
    %v1438 = vand.u32 %v1436, 63
    %v1439 = vsub.s32 0, %v1438
    %v1440 = vsel %vm1434, %v1439, %v1438
    %vm1441 = vcmp.lt.s32.totalorder %v1347, 0
    %v1442 = vsub.s32 0, %v1347
    %v1443 = vsel %vm1441, %v1442, %v1347
    %v1444 = vshrl.u32 %v1443, 6
    %v1445 = vand.u32 %v1443, 63
    %v1446 = vsub.s32 0, %v1445
    %v1447 = vsel %vm1441, %v1446, %v1445
    %vm1448 = vcmp.lt.s32.totalorder %v1348, 0
    %v1449 = vsub.s32 0, %v1348
    %v1450 = vsel %vm1448, %v1449, %v1348
    %v1451 = vshrl.u32 %v1450, 6
    %v1452 = vand.u32 %v1450, 63
    %v1453 = vsub.s32 0, %v1452
    %v1454 = vsel %vm1448, %v1453, %v1452
    %vm1455 = vcmp.lt.s32.totalorder %v1349, 0
    %v1456 = vsub.s32 0, %v1349
    %v1457 = vsel %vm1455, %v1456, %v1349
    %v1458 = vshrl.u32 %v1457, 6
    %v1459 = vand.u32 %v1457, 63
    %v1460 = vsub.s32 0, %v1459
    %v1461 = vsel %vm1455, %v1460, %v1459
    %vm1462 = vcmp.ne.s32.totalorder %v1356, 0
    %vm1463 = vcmp.ne.s32.totalorder %v1363, 0
    %vm1464 = vcmp.ne.s32.totalorder %v1370, 0
    %vm1465 = vcmp.ne.s32.totalorder %v1377, 0
    %vm1466 = vcmp.ne.s32.totalorder %v1384, 0
    %vm1467 = vcmp.ne.s32.totalorder %v1391, 0
    %vm1468 = vcmp.ne.s32.totalorder %v1398, 0
    %vm1469 = vcmp.ne.s32.totalorder %v1405, 0
    %vm1470 = vcmp.ne.s32.totalorder %v1412, 0
    %vm1471 = vcmp.ne.s32.totalorder %v1419, 0
    %vm1472 = vcmp.ne.s32.totalorder %v1426, 0
    %vm1473 = vcmp.ne.s32.totalorder %v1433, 0
    %vm1474 = vcmp.ne.s32.totalorder %v1440, 0
    %vm1475 = vcmp.ne.s32.totalorder %v1447, 0
    %vm1476 = vcmp.ne.s32.totalorder %v1454, 0
    %vm1477 = vcmp.ne.s32.totalorder %v1461, 0
    %vm1478 = vcmp.lt.s32.totalorder %v1356, 0
    %vm1479 = vcmp.lt.s32.totalorder %v1363, 0
    %vm1480 = vcmp.lt.s32.totalorder %v1370, 0
    %vm1481 = vcmp.lt.s32.totalorder %v1377, 0
    %vm1482 = vcmp.lt.s32.totalorder %v1384, 0
    %vm1483 = vcmp.lt.s32.totalorder %v1391, 0
    %vm1484 = vcmp.lt.s32.totalorder %v1398, 0
    %vm1485 = vcmp.lt.s32.totalorder %v1405, 0
    %vm1486 = vcmp.lt.s32.totalorder %v1412, 0
    %vm1487 = vcmp.lt.s32.totalorder %v1419, 0
    %vm1488 = vcmp.lt.s32.totalorder %v1426, 0
    %vm1489 = vcmp.lt.s32.totalorder %v1433, 0
    %vm1490 = vcmp.lt.s32.totalorder %v1440, 0
    %vm1491 = vcmp.lt.s32.totalorder %v1447, 0
    %vm1492 = vcmp.lt.s32.totalorder %v1454, 0
    %vm1493 = vcmp.lt.s32.totalorder %v1461, 0
    %vm1494 = vmand %vm1478, %vm1462
    %vm1495 = vmand %vm1479, %vm1463
    %vm1496 = vmand %vm1480, %vm1464
    %vm1497 = vmand %vm1481, %vm1465
    %vm1498 = vmand %vm1482, %vm1466
    %vm1499 = vmand %vm1483, %vm1467
    %vm1500 = vmand %vm1484, %vm1468
    %vm1501 = vmand %vm1485, %vm1469
    %vm1502 = vmand %vm1486, %vm1470
    %vm1503 = vmand %vm1487, %vm1471
    %vm1504 = vmand %vm1488, %vm1472
    %vm1505 = vmand %vm1489, %vm1473
    %vm1506 = vmand %vm1490, %vm1474
    %vm1507 = vmand %vm1491, %vm1475
    %vm1508 = vmand %vm1492, %vm1476
    %vm1509 = vmand %vm1493, %vm1477
    %v1510 = vadd.s32 %v1356, 64
    %v1511 = vadd.s32 %v1363, 64
    %v1512 = vadd.s32 %v1370, 64
    %v1513 = vadd.s32 %v1377, 64
    %v1514 = vadd.s32 %v1384, 64
    %v1515 = vadd.s32 %v1391, 64
    %v1516 = vadd.s32 %v1398, 64
    %v1517 = vadd.s32 %v1405, 64
    %v1518 = vadd.s32 %v1412, 64
    %v1519 = vadd.s32 %v1419, 64
    %v1520 = vadd.s32 %v1426, 64
    %v1521 = vadd.s32 %v1433, 64
    %v1522 = vadd.s32 %v1440, 64
    %v1523 = vadd.s32 %v1447, 64
    %v1524 = vadd.s32 %v1454, 64
    %v1525 = vadd.s32 %v1461, 64
    %v1526 = vsel %vm1494, %v1510, %v1356
    %v1527 = vsel %vm1495, %v1511, %v1363
    %v1528 = vsel %vm1496, %v1512, %v1370
    %v1529 = vsel %vm1497, %v1513, %v1377
    %v1530 = vsel %vm1498, %v1514, %v1384
    %v1531 = vsel %vm1499, %v1515, %v1391
    %v1532 = vsel %vm1500, %v1516, %v1398
    %v1533 = vsel %vm1501, %v1517, %v1405
    %v1534 = vsel %vm1502, %v1518, %v1412
    %v1535 = vsel %vm1503, %v1519, %v1419
    %v1536 = vsel %vm1504, %v1520, %v1426
    %v1537 = vsel %vm1505, %v1521, %v1433
    %v1538 = vsel %vm1506, %v1522, %v1440
    %v1539 = vsel %vm1507, %v1523, %v1447
    %v1540 = vsel %vm1508, %v1524, %v1454
    %v1541 = vsel %vm1509, %v1525, %v1461
    %vm1542 = vcmp.lt.s32.totalorder %v1526, 60
    %vm1543 = vcmp.lt.s32.totalorder %v1527, 60
    %vm1544 = vcmp.lt.s32.totalorder %v1528, 60
    %vm1545 = vcmp.lt.s32.totalorder %v1529, 60
    %vm1546 = vcmp.lt.s32.totalorder %v1530, 60
    %vm1547 = vcmp.lt.s32.totalorder %v1531, 60
    %vm1548 = vcmp.lt.s32.totalorder %v1532, 60
    %vm1549 = vcmp.lt.s32.totalorder %v1533, 60
    %vm1550 = vcmp.lt.s32.totalorder %v1534, 60
    %vm1551 = vcmp.lt.s32.totalorder %v1535, 60
    %vm1552 = vcmp.lt.s32.totalorder %v1536, 60
    %vm1553 = vcmp.lt.s32.totalorder %v1537, 60
    %vm1554 = vcmp.lt.s32.totalorder %v1538, 60
    %vm1555 = vcmp.lt.s32.totalorder %v1539, 60
    %vm1556 = vcmp.lt.s32.totalorder %v1540, 60
    %vm1557 = vcmp.lt.s32.totalorder %v1541, 60
    %v1558 = vsel %vm1542, 1, 0
    %v1559 = vsel %vm1543, 1, 0
    %v1560 = vsel %vm1544, 1, 0
    %v1561 = vsel %vm1545, 1, 0
    %v1562 = vsel %vm1546, 1, 0
    %v1563 = vsel %vm1547, 1, 0
    %v1564 = vsel %vm1548, 1, 0
    %v1565 = vsel %vm1549, 1, 0
    %v1566 = vsel %vm1550, 1, 0
    %v1567 = vsel %vm1551, 1, 0
    %v1568 = vsel %vm1552, 1, 0
    %v1569 = vsel %vm1553, 1, 0
    %v1570 = vsel %vm1554, 1, 0
    %v1571 = vsel %vm1555, 1, 0
    %v1572 = vsel %vm1556, 1, 0
    %v1573 = vsel %vm1557, 1, 0
    %v1574 = vcvt.s32.f32 %v1558
    %v1575 = vcvt.s32.f32 %v1559
    %v1576 = vcvt.s32.f32 %v1560
    %v1577 = vcvt.s32.f32 %v1561
    %v1578 = vcvt.s32.f32 %v1562
    %v1579 = vcvt.s32.f32 %v1563
    %v1580 = vcvt.s32.f32 %v1564
    %v1581 = vcvt.s32.f32 %v1565
    %v1582 = vcvt.s32.f32 %v1566
    %v1583 = vcvt.s32.f32 %v1567
    %v1584 = vcvt.s32.f32 %v1568
    %v1585 = vcvt.s32.f32 %v1569
    %v1586 = vcvt.s32.f32 %v1570
    %v1587 = vcvt.s32.f32 %v1571
    %v1588 = vcvt.s32.f32 %v1572
    %v1589 = vcvt.s32.f32 %v1573
    %v1590 = vmul.f32 %v1317, %v1317
    %v1591 = vmul.f32 %v1318, %v1318
    %v1592 = vmul.f32 %v1319, %v1319
    %v1593 = vmul.f32 %v1320, %v1320
    %v1594 = vmul.f32 %v1321, %v1321
    %v1595 = vmul.f32 %v1322, %v1322
    %v1596 = vmul.f32 %v1323, %v1323
    %v1597 = vmul.f32 %v1324, %v1324
    %v1598 = vmul.f32 %v1325, %v1325
    %v1599 = vmul.f32 %v1326, %v1326
    %v1600 = vmul.f32 %v1327, %v1327
    %v1601 = vmul.f32 %v1328, %v1328
    %v1602 = vmul.f32 %v1329, %v1329
    %v1603 = vmul.f32 %v1330, %v1330
    %v1604 = vmul.f32 %v1331, %v1331
    %v1605 = vmul.f32 %v1332, %v1332
    %v1606 = vmul.f32 %v1590, %v1574
    %v1607 = vmul.f32 %v1591, %v1575
    %v1608 = vmul.f32 %v1592, %v1576
    %v1609 = vmul.f32 %v1593, %v1577
    %v1610 = vmul.f32 %v1594, %v1578
    %v1611 = vmul.f32 %v1595, %v1579
    %v1612 = vmul.f32 %v1596, %v1580
    %v1613 = vmul.f32 %v1597, %v1581
    %v1614 = vmul.f32 %v1598, %v1582
    %v1615 = vmul.f32 %v1599, %v1583
    %v1616 = vmul.f32 %v1600, %v1584
    %v1617 = vmul.f32 %v1601, %v1585
    %v1618 = vmul.f32 %v1602, %v1586
    %v1619 = vmul.f32 %v1603, %v1587
    %v1620 = vmul.f32 %v1604, %v1588
    %v1621 = vmul.f32 %v1605, %v1589
    %v1622 = vadd.f32 %v1606, %v1607
    %v1623 = vadd.f32 %v1622, %v1608
    %v1624 = vadd.f32 %v1623, %v1609
    %v1625 = vadd.f32 %v1624, %v1610
    %v1626 = vadd.f32 %v1625, %v1611
    %v1627 = vadd.f32 %v1626, %v1612
    %v1628 = vadd.f32 %v1627, %v1613
    %v1629 = vadd.f32 %v1628, %v1614
    %v1630 = vadd.f32 %v1629, %v1615
    %v1631 = vadd.f32 %v1630, %v1616
    %v1632 = vadd.f32 %v1631, %v1617
    %v1633 = vadd.f32 %v1632, %v1618
    %v1634 = vadd.f32 %v1633, %v1619
    %v1635 = vadd.f32 %v1634, %v1620
    %v1636 = vadd.f32 %v1635, %v1621
    %v1637 = vrot.slane %v1636, 4
    %v1638 = vadd.f32 %v1636, %v1637
    %v1639 = vrot.slane %v1638, 2
    %v1640 = vadd.f32 %v1638, %v1639
    %v1641 = vrot.slane %v1640, 1
    %v1642 = vadd.f32 %v1640, %v1641
    %v1643 = vmul.f32 %v1642, 0.008333334
    %v1644 = vld [vmem:[%s5] sm:$0x1]
    %v1646 = vlaneseq
    %v1647 = vshrl.u32 %v1646, 7
    %v1648 = vsub.s32 0, %v1647
    %v1649 = vrot.slane %v1644, %v1648
    %v1651 = vmul.f32 %v1649, %v1317
    %v1652 = vmul.f32 %v1649, %v1318
    %v1653 = vmul.f32 %v1649, %v1319
    %v1654 = vmul.f32 %v1649, %v1320
    %v1655 = vmul.f32 %v1649, %v1321
    %v1656 = vmul.f32 %v1649, %v1322
    %v1657 = vmul.f32 %v1649, %v1323
    %v1658 = vmul.f32 %v1649, %v1324
    %v1659 = vmul.f32 %v1649, %v1325
    %v1660 = vmul.f32 %v1649, %v1326
    %v1661 = vmul.f32 %v1649, %v1327
    %v1662 = vmul.f32 %v1649, %v1328
    %v1663 = vmul.f32 %v1649, %v1329
    %v1664 = vmul.f32 %v1649, %v1330
    %v1665 = vmul.f32 %v1649, %v1331
    %v1666 = vmul.f32 %v1649, %v1332
    %v1667 = vadd.f32 %v1643, 1e-05
    %v1668 = vrsqrt.pop %v1667
    %v1669 = vmul.f32 %v1651, %v1668
    %v1670 = vmul.f32 %v1652, %v1668
    %v1671 = vmul.f32 %v1653, %v1668
    %v1672 = vmul.f32 %v1654, %v1668
    %v1673 = vmul.f32 %v1655, %v1668
    %v1674 = vmul.f32 %v1656, %v1668
    %v1675 = vmul.f32 %v1657, %v1668
    %v1676 = vmul.f32 %v1658, %v1668
    %v1677 = vmul.f32 %v1659, %v1668
    %v1678 = vmul.f32 %v1660, %v1668
    %v1679 = vmul.f32 %v1661, %v1668
    %v1680 = vmul.f32 %v1662, %v1668
    %v1681 = vmul.f32 %v1663, %v1668
    %v1682 = vmul.f32 %v1664, %v1668
    %v1683 = vmul.f32 %v1665, %v1668
    %v1684 = vmul.f32 %v1666, %v1668
    %v1685 = vld [vmem:[%s6] sm:$0x1]
    %v1687 = vlaneseq
    %v1688 = vshrl.u32 %v1687, 7
    %v1689 = vsub.s32 0, %v1688
    %v1690 = vrot.slane %v1685, %v1689
    %v1692 = vadd.f32 %v1669, %v1690
    %v1693 = vadd.f32 %v1670, %v1690
    %v1694 = vadd.f32 %v1671, %v1690
    %v1695 = vadd.f32 %v1672, %v1690
    %v1696 = vadd.f32 %v1673, %v1690
    %v1697 = vadd.f32 %v1674, %v1690
    %v1698 = vadd.f32 %v1675, %v1690
    %v1699 = vadd.f32 %v1676, %v1690
    %v1700 = vadd.f32 %v1677, %v1690
    %v1701 = vadd.f32 %v1678, %v1690
    %v1702 = vadd.f32 %v1679, %v1690
    %v1703 = vadd.f32 %v1680, %v1690
    %v1704 = vadd.f32 %v1681, %v1690
    %v1705 = vadd.f32 %v1682, %v1690
    %v1706 = vadd.f32 %v1683, %v1690
    %v1707 = vadd.f32 %v1684, %v1690
    %v1708 = vld [vmem:[#allocation7] sm:$0xff]
    %v1709 = vld [vmem:[#allocation7 + $0x8] sm:$0xff]
    %v1710 = vld [vmem:[#allocation7 + $0x10] sm:$0xff]
    %v1711 = vld [vmem:[#allocation7 + $0x18] sm:$0xff]
    %v1712 = vld [vmem:[#allocation7 + $0x20] sm:$0xff]
    %v1713 = vld [vmem:[#allocation7 + $0x28] sm:$0xff]
    %v1714 = vld [vmem:[#allocation7 + $0x30] sm:$0xff]
    %v1715 = vld [vmem:[#allocation7 + $0x38] sm:$0xff]
    %v1716 = vadd.f32 %v1692, %v1708
    %v1717 = vadd.f32 %v1693, %v1709
    %v1718 = vadd.f32 %v1694, %v1710
    %v1719 = vadd.f32 %v1695, %v1711
    %v1720 = vadd.f32 %v1696, %v1712
    %v1721 = vadd.f32 %v1697, %v1713
    %v1722 = vadd.f32 %v1698, %v1714
    %v1723 = vadd.f32 %v1699, %v1715
    %v1724 = vadd.f32 %v1700, %v1708
    %v1725 = vadd.f32 %v1701, %v1709
    %v1726 = vadd.f32 %v1702, %v1710
    %v1727 = vadd.f32 %v1703, %v1711
    %v1728 = vadd.f32 %v1704, %v1712
    %v1729 = vadd.f32 %v1705, %v1713
    %v1730 = vadd.f32 %v1706, %v1714
    %v1731 = vadd.f32 %v1707, %v1715
    %1732 = vmax.xlane.f32.xlu0 %v1716
    %v1733 = vpop.xlane.xlu0 %1732
    %1734 = vmax.xlane.f32.xlu0 %v1717
    %v1735 = vpop.xlane.xlu0 %1734
    %1736 = vmax.xlane.f32.xlu0 %v1718
    %v1737 = vpop.xlane.xlu0 %1736
    %1738 = vmax.xlane.f32.xlu0 %v1719
    %v1739 = vpop.xlane.xlu0 %1738
    %1740 = vmax.xlane.f32.xlu0 %v1720
    %v1741 = vpop.xlane.xlu0 %1740
    %1742 = vmax.xlane.f32.xlu0 %v1721
    %v1743 = vpop.xlane.xlu0 %1742
    %1744 = vmax.xlane.f32.xlu0 %v1722
    %v1745 = vpop.xlane.xlu0 %1744
    %1746 = vmax.xlane.f32.xlu0 %v1723
    %v1747 = vpop.xlane.xlu0 %1746
    %1748 = vmax.xlane.f32.xlu0 %v1724
    %v1749 = vpop.xlane.xlu0 %1748
    %1750 = vmax.xlane.f32.xlu0 %v1725
    %v1751 = vpop.xlane.xlu0 %1750
    %1752 = vmax.xlane.f32.xlu0 %v1726
    %v1753 = vpop.xlane.xlu0 %1752
    %1754 = vmax.xlane.f32.xlu0 %v1727
    %v1755 = vpop.xlane.xlu0 %1754
    %1756 = vmax.xlane.f32.xlu0 %v1728
    %v1757 = vpop.xlane.xlu0 %1756
    %1758 = vmax.xlane.f32.xlu0 %v1729
    %v1759 = vpop.xlane.xlu0 %1758
    %1760 = vmax.xlane.f32.xlu0 %v1730
    %v1761 = vpop.xlane.xlu0 %1760
    %1762 = vmax.xlane.f32.xlu0 %v1731
    %v1763 = vpop.xlane.xlu0 %1762
    %v1764 = vsub.f32 %v1716, %v1733
    %v1765 = vsub.f32 %v1717, %v1735
    %v1766 = vsub.f32 %v1718, %v1737
    %v1767 = vsub.f32 %v1719, %v1739
    %v1768 = vsub.f32 %v1720, %v1741
    %v1769 = vsub.f32 %v1721, %v1743
    %v1770 = vsub.f32 %v1722, %v1745
    %v1771 = vsub.f32 %v1723, %v1747
    %v1772 = vsub.f32 %v1724, %v1749
    %v1773 = vsub.f32 %v1725, %v1751
    %v1774 = vsub.f32 %v1726, %v1753
    %v1775 = vsub.f32 %v1727, %v1755
    %v1776 = vsub.f32 %v1728, %v1757
    %v1777 = vsub.f32 %v1729, %v1759
    %v1778 = vsub.f32 %v1730, %v1761
    %v1779 = vsub.f32 %v1731, %v1763
    %v1780 = vmul.f32 %v1764, 1.442695
    %v1781 = vpow.pop %v1780
    %v1782 = vmul.f32 %v1765, 1.442695
    %v1783 = vpow.pop %v1782
    %v1784 = vmul.f32 %v1766, 1.442695
    %v1785 = vpow.pop %v1784
    %v1786 = vmul.f32 %v1767, 1.442695
    %v1787 = vpow.pop %v1786
    %v1788 = vmul.f32 %v1768, 1.442695
    %v1789 = vpow.pop %v1788
    %v1790 = vmul.f32 %v1769, 1.442695
    %v1791 = vpow.pop %v1790
    %v1792 = vmul.f32 %v1770, 1.442695
    %v1793 = vpow.pop %v1792
    %v1794 = vmul.f32 %v1771, 1.442695
    %v1795 = vpow.pop %v1794
    %v1796 = vmul.f32 %v1772, 1.442695
    %v1797 = vpow.pop %v1796
    %v1798 = vmul.f32 %v1773, 1.442695
    %v1799 = vpow.pop %v1798
    %v1800 = vmul.f32 %v1774, 1.442695
    %v1801 = vpow.pop %v1800
    %v1802 = vmul.f32 %v1775, 1.442695
    %v1803 = vpow.pop %v1802
    %v1804 = vmul.f32 %v1776, 1.442695
    %v1805 = vpow.pop %v1804
    %v1806 = vmul.f32 %v1777, 1.442695
    %v1807 = vpow.pop %v1806
    %v1808 = vmul.f32 %v1778, 1.442695
    %v1809 = vpow.pop %v1808
    %v1810 = vmul.f32 %v1779, 1.442695
    %v1811 = vpow.pop %v1810
    %1812 = vadd.xlane.f32.xlu0 %v1781
    %v1813 = vpop.xlane.xlu0 %1812
    %1814 = vadd.xlane.f32.xlu0 %v1783
    %v1815 = vpop.xlane.xlu0 %1814
    %1816 = vadd.xlane.f32.xlu0 %v1785
    %v1817 = vpop.xlane.xlu0 %1816
    %1818 = vadd.xlane.f32.xlu0 %v1787
    %v1819 = vpop.xlane.xlu0 %1818
    %1820 = vadd.xlane.f32.xlu0 %v1789
    %v1821 = vpop.xlane.xlu0 %1820
    %1822 = vadd.xlane.f32.xlu0 %v1791
    %v1823 = vpop.xlane.xlu0 %1822
    %1824 = vadd.xlane.f32.xlu0 %v1793
    %v1825 = vpop.xlane.xlu0 %1824
    %1826 = vadd.xlane.f32.xlu0 %v1795
    %v1827 = vpop.xlane.xlu0 %1826
    %1828 = vadd.xlane.f32.xlu0 %v1797
    %v1829 = vpop.xlane.xlu0 %1828
    %1830 = vadd.xlane.f32.xlu0 %v1799
    %v1831 = vpop.xlane.xlu0 %1830
    %1832 = vadd.xlane.f32.xlu0 %v1801
    %v1833 = vpop.xlane.xlu0 %1832
    %1834 = vadd.xlane.f32.xlu0 %v1803
    %v1835 = vpop.xlane.xlu0 %1834
    %1836 = vadd.xlane.f32.xlu0 %v1805
    %v1837 = vpop.xlane.xlu0 %1836
    %1838 = vadd.xlane.f32.xlu0 %v1807
    %v1839 = vpop.xlane.xlu0 %1838
    %1840 = vadd.xlane.f32.xlu0 %v1809
    %v1841 = vpop.xlane.xlu0 %1840
    %1842 = vadd.xlane.f32.xlu0 %v1811
    %v1843 = vpop.xlane.xlu0 %1842
    %v1844 = vrcp.pop %v1813
    %v1845 = vrcp.pop %v1815
    %v1846 = vrcp.pop %v1817
    %v1847 = vrcp.pop %v1819
    %v1848 = vrcp.pop %v1821
    %v1849 = vrcp.pop %v1823
    %v1850 = vrcp.pop %v1825
    %v1851 = vrcp.pop %v1827
    %v1852 = vrcp.pop %v1829
    %v1853 = vrcp.pop %v1831
    %v1854 = vrcp.pop %v1833
    %v1855 = vrcp.pop %v1835
    %v1856 = vrcp.pop %v1837
    %v1857 = vrcp.pop %v1839
    %v1858 = vrcp.pop %v1841
    %v1859 = vrcp.pop %v1843
    %v1860 = vmul.f32 %v1781, %v1844
    %v1861 = vmul.f32 %v1783, %v1845
    %v1862 = vmul.f32 %v1785, %v1846
    %v1863 = vmul.f32 %v1787, %v1847
    %v1864 = vmul.f32 %v1789, %v1848
    %v1865 = vmul.f32 %v1791, %v1849
    %v1866 = vmul.f32 %v1793, %v1850
    %v1867 = vmul.f32 %v1795, %v1851
    %v1868 = vmul.f32 %v1797, %v1852
    %v1869 = vmul.f32 %v1799, %v1853
    %v1870 = vmul.f32 %v1801, %v1854
    %v1871 = vmul.f32 %v1803, %v1855
    %v1872 = vmul.f32 %v1805, %v1856
    %v1873 = vmul.f32 %v1807, %v1857
    %v1874 = vmul.f32 %v1809, %v1858
    %v1875 = vmul.f32 %v1811, %v1859
    %1876 = vst [vmem:[#allocation8] sm:$0xff] %v1860
    %1877 = vst [vmem:[#allocation8 + $0x8] sm:$0xff] %v1861
    %1878 = vst [vmem:[#allocation8 + $0x10] sm:$0xff] %v1862
    %1879 = vst [vmem:[#allocation8 + $0x18] sm:$0xff] %v1863
    %1880 = vst [vmem:[#allocation8 + $0x20] sm:$0xff] %v1864
    %1881 = vst [vmem:[#allocation8 + $0x28] sm:$0xff] %v1865
    %1882 = vst [vmem:[#allocation8 + $0x30] sm:$0xff] %v1866
    %1883 = vst [vmem:[#allocation8 + $0x38] sm:$0xff] %v1867
    %1884 = vst [vmem:[#allocation8 + $0x40] sm:$0xff] %v1868
    %1885 = vst [vmem:[#allocation8 + $0x48] sm:$0xff] %v1869
    %1886 = vst [vmem:[#allocation8 + $0x50] sm:$0xff] %v1870
    %1887 = vst [vmem:[#allocation8 + $0x58] sm:$0xff] %v1871
    %1888 = vst [vmem:[#allocation8 + $0x60] sm:$0xff] %v1872
    %1889 = vst [vmem:[#allocation8 + $0x68] sm:$0xff] %v1873
    %1890 = vst [vmem:[#allocation8 + $0x70] sm:$0xff] %v1874
    %1891 = vst [vmem:[#allocation8 + $0x78] sm:$0xff] %v1875
    // Predicated region
    $region46: #{tpu_custom_call.1} parent=1 // pred_check
      _
    $region47: #{tpu_custom_call.1} parent=1 // pred_check_branch
      %1893 = sbr.rel (0) target = $region49
    $region48: #{tpu_custom_call.1} parent=1 // pred_region
      %s1895 = ssub.s32 2048, 2048
      %1896 = vsyncadd [#allocation4], %s1895
      %s1897 = sshll.u32 [#allocation8], 4
      %s1898 = int_to_ptr.vmem [resolvable:$true] %s1897
      %1903 = dma.vmem_to_hbm [thread:$0]  %s1898, 2048, %s8, [#allocation4], 128, 128, 8
    $region49: #{tpu_custom_call.1} parent=1 // pred_fallthru
      _
    // Predicated region
    $region50: #{tpu_custom_call.1} parent=1 // pred_check
      _
    $region51: #{tpu_custom_call.1} parent=1 // pred_check_branch
      %1905 = sbr.rel (0) target = $region53
    $region52: #{tpu_custom_call.1} parent=1 // pred_region
      %1906 = dma.done [#allocation4], 2048
    $region53: #{tpu_custom_call.1} parent=1 // pred_fallthru
      _
    %1907 = vsyncpa [#allocation3], 1
    %1908 = vsyncpa [#allocation6], 1
    %1909 = vsyncpa [#allocation4], 1

</llo_original>
